<compile_context>
chip_gen: v5e
topology: v5e:2x2
jax: 0.10.0
libtpu: 0.0.40
codegen_flags: <defaults>
</compile_context>

<pallas_src>
from functools import partial

import jax
import jax.numpy as jnp
from jax import lax
from jax.experimental import pallas as pl
from jax.experimental.pallas import tpu as pltpu


# ---------------------------------------------------------------------------
# helpers
# ---------------------------------------------------------------------------
def _round_up(x, m):
    return ((x + m - 1) // m) * m


def _vmem_limit_bytes():
    """Per-generation VMEM budget (v7x: 64 MiB physical, v5e/v6e: 128 MiB)."""
    cap = None
    try:
        cap = getattr(pltpu.get_tpu_info(), "vmem_capacity_bytes", None)
    except Exception:
        cap = None
    if not cap:
        return 48 * 1024 * 1024                      # safe on every generation
    return max(32 * 1024 * 1024, min(int(0.8 * cap), 112 * 1024 * 1024))


def _choose_row_tile(H, W, c_in, c_inner, co_aug, cd_bytes, vmem_limit):
    """Largest row tile (divisor of H; multiple of 8 unless == H) whose estimated
    attention-kernel VMEM footprint fits ~80% of the per-call limit."""
    def footprint(th):
        blocks = 2 * (2 * th * W * c_in * 4                              # x in + out (f32)
                      + th * W * (3 * c_inner + co_aug) * cd_bytes       # t/f/g row tiles (+ t col)
                      + W * H * (c_inner + co_aug) * cd_bytes)           # resident f/g col-major
        interm = 4 * (2 * th * W * (W + H)                               # e / p (f32)
                      + 3 * th * W * co_aug)                             # out_h / out_v / agg (f32)
        return blocks + interm

    cands = sorted({H, *[d for d in range(8, H, 8) if H % d == 0]}, reverse=True)
    for th in cands:
        if footprint(th) <= int(0.8 * vmem_limit):
            return th
    # TODO(synk): add masked ragged-tail handling so prime H (e.g. 97) can be tiled finer.
    return cands[-1]


# ---------------------------------------------------------------------------
# kernel 1: fused t|f|g 1x1-conv projection (row-tiled), plus column-major copies
# ---------------------------------------------------------------------------
def _tfg_projection_kernel(x_ref, w_ref, b_ref,
                           t_hw_ref, f_hw_ref, g_hw_ref,
                           t_wh_ref, f_wh_ref, g_wh_ref,
                           *, c_inner, ci_p, compute_dtype):
    th, W, c_in = x_ref.shape
    co_aug = g_hw_ref.shape[-1]
    cd = compute_dtype

    x2 = x_ref[...].reshape(th * W, c_in).astype(cd)
    # single wide MXU GEMM; segments start on 128-lane boundaries (0, ci_p, 2*ci_p).
    tfg = jnp.dot(x2, w_ref[...], preferred_element_type=jnp.float32) + b_ref[...]

    t = tfg[:, :c_inner].reshape(th, W, c_inner)
    f = tfg[:, ci_p:ci_p + c_inner].reshape(th, W, c_inner)
    g = tfg[:, 2 * ci_p:2 * ci_p + co_aug].reshape(th, W, co_aug)   # last channel == 1.0

    t_hw_ref[...] = t.astype(cd)
    f_hw_ref[...] = f.astype(cd)
    g_hw_ref[...] = g.astype(cd)
    # Column-major (W, th, C) copies: this relayout is paid once per image here instead
    # of once per row tile inside the attention kernel, where XLU pushes would steal
    # vector-extended slots from the MXU.
    t_wh_ref[...] = jnp.transpose(t, (1, 0, 2)).astype(cd)
    f_wh_ref[...] = jnp.transpose(f, (1, 0, 2)).astype(cd)
    g_wh_ref[...] = jnp.transpose(g, (1, 0, 2)).astype(cd)


# ---------------------------------------------------------------------------
# kernel 2: row-tiled criss-cross attention + inc conv + residual
# ---------------------------------------------------------------------------
def _cc_attention_kernel(x_ref, t_hw_ref, f_hw_ref, g_hw_ref,
                         t_wh_ref, f_wh_ref, g_wh_ref,
                         w_inc_ref, b_inc_ref, o_ref,
                         *, compute_dtype, approx_recip):
    th, W, c_in = x_ref.shape
    H = f_wh_ref.shape[1]
    co_aug = g_hw_ref.shape[-1]
    c_out = co_aug - 1
    cd = compute_dtype

    t_hw = t_hw_ref[...]                                   # (th, W, Ci)
    t_wh = t_wh_ref[...]                                   # (W, th, Ci)

    # ---- CA_Weight: criss-cross affinities (MXU, leading batch dims) --------
    # horizontal: e_h[y, x, k] = sum_c t[y,x,c] * f[y,k,c]
    e_h = lax.dot_general(t_hw, f_hw_ref[...],
                          (((2,), (2,)), ((0,), (0,))),
                          preferred_element_type=jnp.float32)        # (th, W, W)
    # vertical:   e_v[x, y, i] = sum_c t[y,x,c] * f[i,x,c]
    e_v = lax.dot_general(t_wh, f_wh_ref[...],
                          (((2,), (2,)), ((0,), (0,))),
                          preferred_element_type=jnp.float32)        # (W, th, H)

    # CUDA kernel excludes the self row (i == absolute y) from the vertical set:
    # small 2-D (th, H) mask, broadcast over W.
    row0 = pl.program_id(1) * th
    diag = ((row0 + lax.broadcasted_iota(jnp.int32, (th, H), 0)) ==
            lax.broadcasted_iota(jnp.int32, (th, H), 1))             # (th, H)
    e_v = jnp.where(diag[None, :, :], jnp.float32(-1e30), e_v)       # exp() -> exactly 0

    # ---- numerically-stable softmax over the (W + H - 1) criss-cross axis ---
    mh = jnp.max(e_h, axis=2)                                        # (th, W)
    mv = jnp.max(e_v, axis=2)                                        # (W, th)
    m_wh = jnp.maximum(jnp.transpose(mh), mv)                        # (W, th)
    m_hw = jnp.transpose(m_wh)                                       # (th, W)
    p_h = jnp.exp(e_h - m_hw[:, :, None]).astype(cd)                 # (th, W, W)
    p_v = jnp.exp(e_v - m_wh[:, :, None]).astype(cd)                 # (W, th, H); diag -> 0

    # ---- CA_Map: aggregation on the MXU; the trailing g channel is a constant 1,
    # so channel c_out of the result is the softmax denominator (no XLU reduction,
    # and numerator/denominator use the same compute-dtype p). --------------------
    out_h = lax.dot_general(p_h, g_hw_ref[...],
                            (((2,), (1,)), ((0,), (0,))),
                            preferred_element_type=jnp.float32)      # (th, W, co+1)
    out_v = lax.dot_general(p_v, g_wh_ref[...],
                            (((2,), (1,)), ((0,), (0,))),
                            preferred_element_type=jnp.float32)      # (W, th, co+1)
    # the single remaining relayout per tile
    agg = out_h + jnp.transpose(out_v, (1, 0, 2))                    # (th, W, co+1)

    denom = agg[:, :, c_out:c_out + 1]                               # (th, W, 1)
    attn = agg * pl.reciprocal(denom, approx=approx_recip)

    # ---- inc (zero-initialised 1x1 conv; row c_out of w_inc is zero) + residual --
    res = (jnp.dot(attn.reshape(th * W, co_aug).astype(cd), w_inc_ref[...],
                   preferred_element_type=jnp.float32)
           + b_inc_ref[...]).reshape(th, W, c_in)
    o_ref[...] = x_ref[...] + res


# ---------------------------------------------------------------------------
# wrappers
# ---------------------------------------------------------------------------
def cross_attention_forward_nhwc(x_nhwc, params, *, compute_dtype=jnp.bfloat16,
                                 row_tile=None):
    """NHWC forward: x (N, H, W, C_in) f32 -> (N, H, W, C_in) f32."""
    wt, bt, wf, bf, wg, bg, winc, binc = params
    N, H, W, C_in = x_nhwc.shape
    c_inner = wt.shape[1]
    c_out = wg.shape[1]
    co_aug = c_out + 1                         # + constant-one channel (fused softmax denom)
    ci_p = _round_up(c_inner, 128)             # lane-aligned segment starts in the fused GEMM
    k_tot = 2 * ci_p + co_aug
    cd = jnp.dtype(compute_dtype)
    approx = cd != jnp.dtype(jnp.float32)      # exact division on the f32 validation path

    # fused, lane-aligned [t | f | g | 1] projection weights / biases
    w_tfg = jnp.zeros((C_in, k_tot), jnp.float32)
    w_tfg = w_tfg.at[:, :c_inner].set(wt)
    w_tfg = w_tfg.at[:, ci_p:ci_p + c_inner].set(wf)
    w_tfg = w_tfg.at[:, 2 * ci_p:2 * ci_p + c_out].set(wg)
    w_tfg = w_tfg.astype(cd)
    b_tfg = jnp.zeros((1, k_tot), jnp.float32)
    b_tfg = b_tfg.at[:, :c_inner].set(bt)
    b_tfg = b_tfg.at[:, ci_p:ci_p + c_inner].set(bf)
    b_tfg = b_tfg.at[:, 2 * ci_p:2 * ci_p + c_out].set(bg)
    b_tfg = b_tfg.at[:, 2 * ci_p + c_out].set(1.0)            # ones channel
    # inc conv weights with a zero row for the constant-one channel
    w_inc = jnp.zeros((co_aug, C_in), jnp.float32).at[:c_out, :].set(winc).astype(cd)
    b_inc = binc.astype(jnp.float32)

    vmem_limit = _vmem_limit_bytes()
    th = row_tile if row_tile is not None else _choose_row_tile(
        H, W, C_in, c_inner, co_aug, cd.itemsize, vmem_limit)
    if H % th != 0 or (th != H and th % 8 != 0):
        raise ValueError(f"row tile {th} must divide H={H} and be a multiple of 8")
    n_th = H // th

    x_f32 = x_nhwc.astype(jnp.float32)
    cparams = pltpu.CompilerParams(
        dimension_semantics=("parallel", "parallel"),   # (batch, row-tile) independent
        vmem_limit_bytes=vmem_limit)

    # ---- kernel 1: fused t|f|g projection, row-tiled --------------------------
    t_hw, f_hw, g_hw, t_wh, f_wh, g_wh = pl.pallas_call(
        partial(_tfg_projection_kernel, c_inner=c_inner, ci_p=ci_p, compute_dtype=cd),
        out_shape=(
            jax.ShapeDtypeStruct((N, H, W, c_inner), cd),
            jax.ShapeDtypeStruct((N, H, W, c_inner), cd),
            jax.ShapeDtypeStruct((N, H, W, co_aug), cd),
            jax.ShapeDtypeStruct((N, W, H, c_inner), cd),
            jax.ShapeDtypeStruct((N, W, H, c_inner), cd),
            jax.ShapeDtypeStruct((N, W, H, co_aug), cd),
        ),
        grid_spec=pltpu.PrefetchScalarGridSpec(
            num_scalar_prefetch=0,
            grid=(N, n_th),
            in_specs=[
                pl.BlockSpec((None, th, W, C_in), lambda n, h: (n, h, 0, 0)),
                pl.BlockSpec((C_in, k_tot), lambda n, h: (0, 0)),
                pl.BlockSpec((1, k_tot), lambda n, h: (0, 0)),
            ],
            out_specs=[
                pl.BlockSpec((None, th, W, c_inner), lambda n, h: (n, h, 0, 0)),
                pl.BlockSpec((None, th, W, c_inner), lambda n, h: (n, h, 0, 0)),
                pl.BlockSpec((None, th, W, co_aug), lambda n, h: (n, h, 0, 0)),
                pl.BlockSpec((None, W, th, c_inner), lambda n, h: (n, 0, h, 0)),
                pl.BlockSpec((None, W, th, c_inner), lambda n, h: (n, 0, h, 0)),
                pl.BlockSpec((None, W, th, co_aug), lambda n, h: (n, 0, h, 0)),
            ],
        ),
        compiler_params=cparams,
    )(x_f32, w_tfg, b_tfg)

    # ---- kernel 2: row-tiled criss-cross attention -----------------------------
    # The full-image column-major f/g blocks are constant across the inner (row-tile)
    # grid axis, so the pipeline fetches them once per batch element.
    # TODO(synk): single-buffer (pl.Buffered(1)) the resident f_wh/g_wh blocks to halve
    # their VMEM footprint once stable; also consider packing 2 rows per MXU push on
    # v6e/v7x (affinity matmuls underfill the 256x256 array at W~96, Ci=64).
    out = pl.pallas_call(
        partial(_cc_attention_kernel, compute_dtype=cd, approx_recip=approx),
        out_shape=jax.ShapeDtypeStruct((N, H, W, C_in), jnp.float32),
        grid_spec=pltpu.PrefetchScalarGridSpec(
            num_scalar_prefetch=0,
            grid=(N, n_th),
            in_specs=[
                pl.BlockSpec((None, th, W, C_in), lambda n, h: (n, h, 0, 0)),     # x (residual)
                pl.BlockSpec((None, th, W, c_inner), lambda n, h: (n, h, 0, 0)),  # t row tile
                pl.BlockSpec((None, th, W, c_inner), lambda n, h: (n, h, 0, 0)),  # f row tile
                pl.BlockSpec((None, th, W, co_aug), lambda n, h: (n, h, 0, 0)),   # g row tile
                pl.BlockSpec((None, W, th, c_inner), lambda n, h: (n, 0, h, 0)),  # t col-major tile
                pl.BlockSpec((None, W, H, c_inner), lambda n, h: (n, 0, 0, 0)),   # f full, col-major
                pl.BlockSpec((None, W, H, co_aug), lambda n, h: (n, 0, 0, 0)),    # g full, col-major
                pl.BlockSpec((co_aug, C_in), lambda n, h: (0, 0)),
                pl.BlockSpec((1, C_in), lambda n, h: (0, 0)),
            ],
            out_specs=pl.BlockSpec((None, th, W, C_in), lambda n, h: (n, h, 0, 0)),
        ),
        input_output_aliases={0: 0},              # out = x + res: reuse the x buffer
        compiler_params=cparams,
    )(x_f32, t_hw, f_hw, g_hw, t_wh, f_wh, g_wh, w_inc, b_inc)
    return out


def cross_attention_forward(x_nchw, params, *, compute_dtype=jnp.bfloat16, row_tile=None):
    """NCHW wrapper matching the PyTorch module: (N, C_in, H, W) f32 -> same."""
    # TODO(synk): keep the surrounding model NHWC (and bf16) end-to-end; these two
    # full-tensor HBM transposes dominate end-to-end cost on v6e at CCNet sizes.
    # TODO(synk): for toy spatial sizes, block several batch elements per grid step to
    # amortize the ~0.35us per-grid-step pipeline overhead.
    x_nhwc = jnp.transpose(x_nchw, (0, 2, 3, 1))
    out_nhwc = cross_attention_forward_nhwc(x_nhwc, params,
                                            compute_dtype=compute_dtype,
                                            row_tile=row_tile)
    return jnp.transpose(out_nhwc, (0, 3, 1, 2))


def cross_attention_reference(x_nchw, params):
    """Plain-JAX f32 reference of the same forward (for validation)."""
    wt, bt, wf, bf, wg, bg, winc, binc = params
    N, C_in, H, W = x_nchw.shape
    x = x_nchw.astype(jnp.float32)

    def conv1x1(inp, w, b):
        return jnp.einsum('ncyx,cd->ndyx', inp, w) + b[0][None, :, None, None]

    t = conv1x1(x, wt, bt)
    f = conv1x1(x, wf, bf)
    g = conv1x1(x, wg, bg)

    e_h = jnp.einsum('ncyx,ncyk->nyxk', t, f)                        # (N,H,W,W)
    e_v = jnp.einsum('ncyx,ncix->niyx', t, f)                        # (N,H,H,W)
    diag = (jnp.arange(H)[:, None] == jnp.arange(H)[None, :])[None, :, :, None]
    e_v_m = jnp.where(diag, -1e30, e_v)
    m = jnp.maximum(e_h.max(axis=3), e_v_m.max(axis=1))              # (N,H,W)
    p_h = jnp.exp(e_h - m[..., None])
    p_v = jnp.where(diag, 0.0, jnp.exp(e_v_m - m[:, None]))
    denom = p_h.sum(axis=3) + p_v.sum(axis=1)
    out_h = jnp.einsum('nyxk,ncyk->ncyx', p_h, g)
    out_v = jnp.einsum('niyx,ncix->ncyx', p_v, g)
    attn = (out_h + out_v) / denom[:, None]
    res = jnp.einsum('ncyx,cd->ndyx', attn, winc) + binc[0][None, :, None, None]
    return x + res


if __name__ == "__main__":
    N, C_in, H, W = 2, 8, 16, 16       # small shapes consistent with the module
    C_inner, C_out = 4, 8              # dim_inner, dim_out

    key = jax.random.PRNGKey(0)
    keys = jax.random.split(key, 9)
    x = jax.random.normal(keys[0], (N, C_in, H, W), dtype=jnp.float32)

    # PyTorch Conv2d 1x1 weights, stored as (C_in, C_out) matrices.
    wt = 0.1 * jax.random.normal(keys[1], (C_in, C_inner), dtype=jnp.float32)
    bt = 0.1 * jax.random.normal(keys[2], (1, C_inner), dtype=jnp.float32)
    wf = 0.1 * jax.random.normal(keys[3], (C_in, C_inner), dtype=jnp.float32)
    bf = 0.1 * jax.random.normal(keys[4], (1, C_inner), dtype=jnp.float32)
    wg = 0.1 * jax.random.normal(keys[5], (C_in, C_out), dtype=jnp.float32)
    bg = 0.1 * jax.random.normal(keys[6], (1, C_out), dtype=jnp.float32)

    # (1) Module as initialised: `inc` conv is constant-zero, so forward must return x.
    winc0 = jnp.zeros((C_out, C_in), dtype=jnp.float32)
    binc0 = jnp.zeros((1, C_in), dtype=jnp.float32)
    params0 = (wt, bt, wf, bf, wg, bg, winc0, binc0)
    out0 = jax.block_until_ready(cross_attention_forward(x, params0))
    assert out0.shape == x.shape and out0.dtype == jnp.float32
    assert bool(jnp.all(jnp.isfinite(out0)))
    assert bool(jnp.allclose(out0, x, atol=1e-5))

    # (2) Non-trivial inc weights: exercise the full attention path against the reference.
    winc = 0.1 * jax.random.normal(keys[7], (C_out, C_in), dtype=jnp.float32)
    binc = 0.1 * jax.random.normal(keys[8], (1, C_in), dtype=jnp.float32)
    params = (wt, bt, wf, bf, wg, bg, winc, binc)
    ref = cross_attention_reference(x, params)

    out_bf16 = jax.block_until_ready(cross_attention_forward(x, params))
    assert bool(jnp.all(jnp.isfinite(out_bf16)))
    assert bool(jnp.allclose(out_bf16, ref, atol=2e-2, rtol=2e-2))

    out_f32 = jax.block_until_ready(
        cross_attention_forward(x, params, compute_dtype=jnp.float32))
    assert bool(jnp.allclose(out_f32, ref, atol=5e-3, rtol=5e-3))

    # (3) Exercise the row-tiled path (2 row tiles of 8): staged f/g + per-tile diag offsets.
    out_tiled = jax.block_until_ready(
        cross_attention_forward(x, params, compute_dtype=jnp.float32, row_tile=8))
    assert bool(jnp.allclose(out_tiled, ref, atol=5e-3, rtol=5e-3))

    print("KERNEL_OK")
</pallas_src>

<mosaic_0001>
module attributes {stable_mosaic.version = 11 : i64} {
  func.func @_tfg_projection_kernel(%arg0: i32, %arg1: i32, %arg2: memref<1x16x16x8xf32, #tpu.memory_space<vmem>>, %arg3: memref<8x265xbf16, #tpu.memory_space<vmem>>, %arg4: memref<1x265xf32, #tpu.memory_space<vmem>>, %arg5: memref<1x16x16x4xbf16, #tpu.memory_space<vmem>>, %arg6: memref<1x16x16x4xbf16, #tpu.memory_space<vmem>>, %arg7: memref<1x16x16x9xbf16, #tpu.memory_space<vmem>>, %arg8: memref<1x16x16x4xbf16, #tpu.memory_space<vmem>>, %arg9: memref<1x16x16x4xbf16, #tpu.memory_space<vmem>>, %arg10: memref<1x16x16x9xbf16, #tpu.memory_space<vmem>>) attributes {dimension_semantics = [#tpu.dimension_semantics<parallel>, #tpu.dimension_semantics<parallel>], iteration_bounds = array<i64: 2, 1>, scalar_prefetch = 0 : i64, scratch_operands = 0 : i64, tpu.core_type = #tpu.core_type<tc>, window_params = [{transform_indices = @transform_0, window_bounds = array<i64: 1, 16, 16, 8>}, {pipeline_mode = #tpu.pipeline_mode<synchronous>, transform_indices = @transform_1, window_bounds = array<i64: 8, 265>}, {pipeline_mode = #tpu.pipeline_mode<synchronous>, transform_indices = @transform_2, window_bounds = array<i64: 1, 265>}, {transform_indices = @transform_3, window_bounds = array<i64: 1, 16, 16, 4>}, {transform_indices = @transform_4, window_bounds = array<i64: 1, 16, 16, 4>}, {transform_indices = @transform_5, window_bounds = array<i64: 1, 16, 16, 9>}, {transform_indices = @transform_6, window_bounds = array<i64: 1, 16, 16, 4>}, {transform_indices = @transform_7, window_bounds = array<i64: 1, 16, 16, 4>}, {transform_indices = @transform_8, window_bounds = array<i64: 1, 16, 16, 9>}]} {
    %c0 = arith.constant 0 : index
    %c0_0 = arith.constant 0 : index
    %c0_1 = arith.constant 0 : index
    %c0_2 = arith.constant 0 : index
    %0 = vector.load %arg2[%c0, %c0_0, %c0_1, %c0_2] : memref<1x16x16x8xf32, #tpu.memory_space<vmem>>, vector<1x16x16x8xf32>
    %1 = vector.shape_cast %0 : vector<1x16x16x8xf32> to vector<16x16x8xf32>
    %2 = vector.shape_cast %1 : vector<16x16x8xf32> to vector<256x8xf32>
    %3 = arith.truncf %2 : vector<256x8xf32> to vector<256x8xbf16>
    %c0_3 = arith.constant 0 : index
    %c0_4 = arith.constant 0 : index
    %4 = vector.load %arg3[%c0_3, %c0_4] : memref<8x265xbf16, #tpu.memory_space<vmem>>, vector<8x265xbf16>
    %cst = arith.constant dense<0.000000e+00> : vector<256x265xf32>
    %5 = tpu.matmul %3, %4, %cst {dimension_numbers = #tpu.dot_dimension_numbers<[1], [0], [0], [1], [0, 0, 1, 1], [], []>} : vector<256x8xbf16>, vector<8x265xbf16>, vector<256x265xf32> -> vector<256x265xf32>
    %c0_5 = arith.constant 0 : index
    %c0_6 = arith.constant 0 : index
    %6 = vector.load %arg4[%c0_5, %c0_6] : memref<1x265xf32, #tpu.memory_space<vmem>>, vector<1x265xf32>
    %7 = vector.broadcast %6 : vector<1x265xf32> to vector<256x265xf32>
    %8 = arith.addf %5, %7 : vector<256x265xf32>
    %9 = vector.extract_strided_slice %8 {offsets = [0, 0], sizes = [256, 4], strides = [1, 1]} : vector<256x265xf32> to vector<256x4xf32>
    %10 = vector.shape_cast %9 : vector<256x4xf32> to vector<16x16x4xf32>
    %11 = vector.extract_strided_slice %8 {offsets = [0, 128], sizes = [256, 4], strides = [1, 1]} : vector<256x265xf32> to vector<256x4xf32>
    %12 = vector.shape_cast %11 : vector<256x4xf32> to vector<16x16x4xf32>
    %13 = vector.extract_strided_slice %8 {offsets = [0, 256], sizes = [256, 9], strides = [1, 1]} : vector<256x265xf32> to vector<256x9xf32>
    %14 = vector.shape_cast %13 : vector<256x9xf32> to vector<16x16x9xf32>
    %15 = arith.truncf %10 : vector<16x16x4xf32> to vector<16x16x4xbf16>
    %c0_7 = arith.constant 0 : index
    %c0_8 = arith.constant 0 : index
    %c0_9 = arith.constant 0 : index
    %c0_10 = arith.constant 0 : index
    %16 = vector.load %arg5[%c0_7, %c0_8, %c0_9, %c0_10] : memref<1x16x16x4xbf16, #tpu.memory_space<vmem>>, vector<1x16x16x4xbf16>
    %17 = vector.shape_cast %16 : vector<1x16x16x4xbf16> to vector<16x16x4xbf16>
    %18 = vector.shape_cast %15 : vector<16x16x4xbf16> to vector<1x16x16x4xbf16>
    tpu.vector_store %arg5[%c0_7, %c0_8, %c0_9, %c0_10], %18 {strides = array<i32>} : memref<1x16x16x4xbf16, #tpu.memory_space<vmem>>, vector<1x16x16x4xbf16>,
    %19 = arith.truncf %12 : vector<16x16x4xf32> to vector<16x16x4xbf16>
    %c0_11 = arith.constant 0 : index
    %c0_12 = arith.constant 0 : index
    %c0_13 = arith.constant 0 : index
    %c0_14 = arith.constant 0 : index
    %20 = vector.load %arg6[%c0_11, %c0_12, %c0_13, %c0_14] : memref<1x16x16x4xbf16, #tpu.memory_space<vmem>>, vector<1x16x16x4xbf16>
    %21 = vector.shape_cast %20 : vector<1x16x16x4xbf16> to vector<16x16x4xbf16>
    %22 = vector.shape_cast %19 : vector<16x16x4xbf16> to vector<1x16x16x4xbf16>
    tpu.vector_store %arg6[%c0_11, %c0_12, %c0_13, %c0_14], %22 {strides = array<i32>} : memref<1x16x16x4xbf16, #tpu.memory_space<vmem>>, vector<1x16x16x4xbf16>,
    %23 = arith.truncf %14 : vector<16x16x9xf32> to vector<16x16x9xbf16>
    %c0_15 = arith.constant 0 : index
    %c0_16 = arith.constant 0 : index
    %c0_17 = arith.constant 0 : index
    %c0_18 = arith.constant 0 : index
    %24 = vector.load %arg7[%c0_15, %c0_16, %c0_17, %c0_18] : memref<1x16x16x9xbf16, #tpu.memory_space<vmem>>, vector<1x16x16x9xbf16>
    %25 = vector.shape_cast %24 : vector<1x16x16x9xbf16> to vector<16x16x9xbf16>
    %26 = vector.shape_cast %23 : vector<16x16x9xbf16> to vector<1x16x16x9xbf16>
    tpu.vector_store %arg7[%c0_15, %c0_16, %c0_17, %c0_18], %26 {strides = array<i32>} : memref<1x16x16x9xbf16, #tpu.memory_space<vmem>>, vector<1x16x16x9xbf16>,
    %27 = tpu.transpose %10, [1, 0, 2] : vector<16x16x4xf32> -> vector<16x16x4xf32>
    %28 = arith.truncf %27 : vector<16x16x4xf32> to vector<16x16x4xbf16>
    %c0_19 = arith.constant 0 : index
    %c0_20 = arith.constant 0 : index
    %c0_21 = arith.constant 0 : index
    %c0_22 = arith.constant 0 : index
    %29 = vector.load %arg8[%c0_19, %c0_20, %c0_21, %c0_22] : memref<1x16x16x4xbf16, #tpu.memory_space<vmem>>, vector<1x16x16x4xbf16>
    %30 = vector.shape_cast %29 : vector<1x16x16x4xbf16> to vector<16x16x4xbf16>
    %31 = vector.shape_cast %28 : vector<16x16x4xbf16> to vector<1x16x16x4xbf16>
    tpu.vector_store %arg8[%c0_19, %c0_20, %c0_21, %c0_22], %31 {strides = array<i32>} : memref<1x16x16x4xbf16, #tpu.memory_space<vmem>>, vector<1x16x16x4xbf16>,
    %32 = tpu.transpose %12, [1, 0, 2] : vector<16x16x4xf32> -> vector<16x16x4xf32>
    %33 = arith.truncf %32 : vector<16x16x4xf32> to vector<16x16x4xbf16>
    %c0_23 = arith.constant 0 : index
    %c0_24 = arith.constant 0 : index
    %c0_25 = arith.constant 0 : index
    %c0_26 = arith.constant 0 : index
    %34 = vector.load %arg9[%c0_23, %c0_24, %c0_25, %c0_26] : memref<1x16x16x4xbf16, #tpu.memory_space<vmem>>, vector<1x16x16x4xbf16>
    %35 = vector.shape_cast %34 : vector<1x16x16x4xbf16> to vector<16x16x4xbf16>
    %36 = vector.shape_cast %33 : vector<16x16x4xbf16> to vector<1x16x16x4xbf16>
    tpu.vector_store %arg9[%c0_23, %c0_24, %c0_25, %c0_26], %36 {strides = array<i32>} : memref<1x16x16x4xbf16, #tpu.memory_space<vmem>>, vector<1x16x16x4xbf16>,
    %37 = tpu.transpose %14, [1, 0, 2] : vector<16x16x9xf32> -> vector<16x16x9xf32>
    %38 = arith.truncf %37 : vector<16x16x9xf32> to vector<16x16x9xbf16>
    %c0_27 = arith.constant 0 : index
    %c0_28 = arith.constant 0 : index
    %c0_29 = arith.constant 0 : index
    %c0_30 = arith.constant 0 : index
    %39 = vector.load %arg10[%c0_27, %c0_28, %c0_29, %c0_30] : memref<1x16x16x9xbf16, #tpu.memory_space<vmem>>, vector<1x16x16x9xbf16>
    %40 = vector.shape_cast %39 : vector<1x16x16x9xbf16> to vector<16x16x9xbf16>
    %41 = vector.shape_cast %38 : vector<16x16x9xbf16> to vector<1x16x16x9xbf16>
    tpu.vector_store %arg10[%c0_27, %c0_28, %c0_29, %c0_30], %41 {strides = array<i32>} : memref<1x16x16x9xbf16, #tpu.memory_space<vmem>>, vector<1x16x16x9xbf16>,
    return
  }
  func.func @transform_0(%arg0: i32, %arg1: i32) -> (i32, i32, i32, i32) {
    %c0_i32 = arith.constant 0 : i32
    %c0_i32_0 = arith.constant 0 : i32
    %c0_i32_1 = arith.constant 0 : i32
    return %arg0, %arg1, %c0_i32, %c0_i32_0 : i32, i32, i32, i32
  }
  func.func @transform_1(%arg0: i32, %arg1: i32) -> (i32, i32) {
    %c0_i32 = arith.constant 0 : i32
    %c0_i32_0 = arith.constant 0 : i32
    %c0_i32_1 = arith.constant 0 : i32
    return %c0_i32, %c0_i32_0 : i32, i32
  }
  func.func @transform_2(%arg0: i32, %arg1: i32) -> (i32, i32) {
    %c0_i32 = arith.constant 0 : i32
    %c0_i32_0 = arith.constant 0 : i32
    %c0_i32_1 = arith.constant 0 : i32
    return %c0_i32, %c0_i32_0 : i32, i32
  }
  func.func @transform_3(%arg0: i32, %arg1: i32) -> (i32, i32, i32, i32) {
    %c0_i32 = arith.constant 0 : i32
    %c0_i32_0 = arith.constant 0 : i32
    %c0_i32_1 = arith.constant 0 : i32
    return %arg0, %arg1, %c0_i32, %c0_i32_0 : i32, i32, i32, i32
  }
  func.func @transform_4(%arg0: i32, %arg1: i32) -> (i32, i32, i32, i32) {
    %c0_i32 = arith.constant 0 : i32
    %c0_i32_0 = arith.constant 0 : i32
    %c0_i32_1 = arith.constant 0 : i32
    return %arg0, %arg1, %c0_i32, %c0_i32_0 : i32, i32, i32, i32
  }
  func.func @transform_5(%arg0: i32, %arg1: i32) -> (i32, i32, i32, i32) {
    %c0_i32 = arith.constant 0 : i32
    %c0_i32_0 = arith.constant 0 : i32
    %c0_i32_1 = arith.constant 0 : i32
    return %arg0, %arg1, %c0_i32, %c0_i32_0 : i32, i32, i32, i32
  }
  func.func @transform_6(%arg0: i32, %arg1: i32) -> (i32, i32, i32, i32) {
    %c0_i32 = arith.constant 0 : i32
    %c0_i32_0 = arith.constant 0 : i32
    %c0_i32_1 = arith.constant 0 : i32
    return %arg0, %c0_i32, %arg1, %c0_i32_0 : i32, i32, i32, i32
  }
  func.func @transform_7(%arg0: i32, %arg1: i32) -> (i32, i32, i32, i32) {
    %c0_i32 = arith.constant 0 : i32
    %c0_i32_0 = arith.constant 0 : i32
    %c0_i32_1 = arith.constant 0 : i32
    return %arg0, %c0_i32, %arg1, %c0_i32_0 : i32, i32, i32, i32
  }
  func.func @transform_8(%arg0: i32, %arg1: i32) -> (i32, i32, i32, i32) {
    %c0_i32 = arith.constant 0 : i32
    %c0_i32_0 = arith.constant 0 : i32
    %c0_i32_1 = arith.constant 0 : i32
    return %arg0, %c0_i32, %arg1, %c0_i32_0 : i32, i32, i32, i32
  }
}

</mosaic_0001>

<llo_original>
// kernel: tpu_custom_call.1
$region0: #{tpu_custom_call.1}
  #allocation0 [shape = 'u32[]', space=smem, size = 0x4, offset = 0x4, fixed_abs, tag = 'smem constant byte address 0x4 - core index']
  #allocation1 [shape = 'u32[72,128]{1,0:T(1,128)}', space=vmem, size = 0x9000, scoped, tag = 'internal scratch']
  %s0 = inlined_call_operand.vmem [shape: f32[2,16,16,8], index: 0, kind: input, shape index: {}]
  %s1 = inlined_call_operand.vmem [shape: bf16[8,265], index: 1, kind: input, shape index: {}]
  %s2 = inlined_call_operand.vmem [shape: f32[1,265], index: 2, kind: input, shape index: {}]
  %s3 = inlined_call_operand.vmem [shape: bf16[2,16,16,4], index: 3, kind: output, shape index: {0}]
  %s4 = inlined_call_operand.vmem [shape: bf16[2,16,16,4], index: 4, kind: output, shape index: {1}]
  %s5 = inlined_call_operand.vmem [shape: bf16[2,16,16,9], index: 5, kind: output, shape index: {2}]
  %s6 = inlined_call_operand.vmem [shape: bf16[2,16,16,4], index: 6, kind: output, shape index: {3}]
  %s7 = inlined_call_operand.vmem [shape: bf16[2,16,16,4], index: 7, kind: output, shape index: {4}]
  %s8 = inlined_call_operand.vmem [shape: bf16[2,16,16,9], index: 8, kind: output, shape index: {5}]
  %9 = xla_tuple %s3, %s4, %s5, %s6, %s7, %s8
  %s10 = sld [smem:[#allocation0]]
  $region85: #{tpu_custom_call.1} parent=0
    _
  %s12 = ssub.s32 1, %s10
  %s13 = scalar_select 0, %s12, %s10
  loop: start=0, step=1, limit=4
  $region2: #{tpu_custom_call.1} parent=0 // loop_pre_header
    _
  $region3: #{tpu_custom_call.1} parent=0 // loop_header
    %s15 = sphi 0, %s19
    %p16 = scmp.ge.s32.totalorder %s15, 4
    %s22 = sphi 0, %s34
    %s23 = sphi 0, %s30
    %s24 = sphi 0, %s22
    %s25 = sphi 0, %s23
    %s26 = sphi 0, %s24
    %s27 = sphi 0, %s25
    %s39 = sphi 0, %s41
    %s42 = sphi 0, %s39
    %s43 = sphi 0, %s42
    %s59 = sphi 0, %s43
    %s63 = sphi 0, %s63
    %s65 = sphi 0, %s63
    %s66 = sphi 0, %s65
    %s80 = sphi 0, %s66
    %s84 = sphi 0, %s84
    %s86 = sphi 0, %s84
    %s87 = sphi 0, %s86
    %s101 = sphi 0, %s87
    %s109 = sphi 0, %s111
    %s112 = sphi 0, %s109
    %s113 = sphi 0, %s112
    %s129 = sphi 0, %s113
    %s137 = sphi 0, %s139
    %s140 = sphi 0, %s137
    %s141 = sphi 0, %s140
    %s157 = sphi 0, %s141
    %s165 = sphi 0, %s167
    %s168 = sphi 0, %s165
    %s169 = sphi 0, %s168
    %s185 = sphi 0, %s169
    %s193 = sphi 0, %s195
    %s196 = sphi 0, %s193
    %s197 = sphi 0, %s196
    %s213 = sphi 0, %s197
    %s221 = sphi 0, %s223
    %s224 = sphi 0, %s221
    %s225 = sphi 0, %s224
    %s241 = sphi 0, %s225
    %s249 = sphi 0, %s251
    %s252 = sphi 0, %s249
    %s253 = sphi 0, %s252
    %s269 = sphi 0, %s253
  $region4: #{tpu_custom_call.1} parent=0 // loop_header_branch
    %18 = sbr.rel (%p16) target = $region8
  $region5: #{tpu_custom_call.1} parent=0 // loop_body
    %s20 = ssub.s32 %s15, 1
    %s21 = ssub.s32 %s15, 2
    %s28 = sadd.s32 1, %s23
    %p29 = scmp.ge.s32.totalorder %s28, 1
    %s30 = scalar_select %p29, 0, %s28
    %s31 = sadd.s32 1, %s22
    %s32 = scalar_select %p29, %s31, %s22
    %p33 = scmp.ge.s32.totalorder %s32, 2
    %s34 = scalar_select %p33, 0, %s32
    %s35 = ssub.s32 %s22, %s34
    %s36 = ssub.s32 %s23, %s30
    %s37 = sor.u32 %s35, %s36
    %p38 = scmp.eq.s32.totalorder %s37, 0
    %s40 = sadd.s32 %s39, 1
    %s41 = scalar_select %p38, %s39, %s40
    %p44 = pneg %p38
    %p45 = scmp.eq.s32.totalorder %s15, 1
    %p46 = por %p44, %p45
    %p47 = scmp.ne.s32.totalorder %s39, %s42
    %p48 = scmp.eq.s32.totalorder %s15, 0
    %p49 = por %p47, %p48
    %p50 = scmp.ne.s32.totalorder %s39, %s42
    %p51 = scmp.eq.s32.totalorder %s20, 1
    %p52 = por %p50, %p51
    %p53 = scmp.ne.s32.totalorder %s42, %s43
    %p54 = scmp.eq.s32.totalorder %s20, 0
    %p55 = por %p53, %p54
    %p56 = scmp.ne.s32.totalorder %s42, %s43
    %p57 = scmp.eq.s32.totalorder %s21, 1
    %p58 = por %p56, %p57
    %p60 = scmp.ne.s32.totalorder %s43, %s59
    %p61 = scmp.eq.s32.totalorder %s21, 0
    %p62 = por %p60, %p61
    %s64 = sadd.s32 %s63, 1
    %p67 = scmp.eq.s32.totalorder %s15, 1
    %p68 = scmp.ne.s32.totalorder %s63, %s65
    %p69 = scmp.eq.s32.totalorder %s15, 0
    %p70 = por %p68, %p69
    %p71 = scmp.ne.s32.totalorder %s63, %s65
    %p72 = scmp.eq.s32.totalorder %s20, 1
    %p73 = por %p71, %p72
    %p74 = scmp.ne.s32.totalorder %s65, %s66
    %p75 = scmp.eq.s32.totalorder %s20, 0
    %p76 = por %p74, %p75
    %p77 = scmp.ne.s32.totalorder %s65, %s66
    %p78 = scmp.eq.s32.totalorder %s21, 1
    %p79 = por %p77, %p78
    %p81 = scmp.ne.s32.totalorder %s66, %s80
    %p82 = scmp.eq.s32.totalorder %s21, 0
    %p83 = por %p81, %p82
    %s85 = sadd.s32 %s84, 1
    %p88 = scmp.eq.s32.totalorder %s15, 1
    %p89 = scmp.ne.s32.totalorder %s84, %s86
    %p90 = scmp.eq.s32.totalorder %s15, 0
    %p91 = por %p89, %p90
    %p92 = scmp.ne.s32.totalorder %s84, %s86
    %p93 = scmp.eq.s32.totalorder %s20, 1
    %p94 = por %p92, %p93
    %p95 = scmp.ne.s32.totalorder %s86, %s87
    %p96 = scmp.eq.s32.totalorder %s20, 0
    %p97 = por %p95, %p96
    %p98 = scmp.ne.s32.totalorder %s86, %s87
    %p99 = scmp.eq.s32.totalorder %s21, 1
    %p100 = por %p98, %p99
    %p102 = scmp.ne.s32.totalorder %s87, %s101
    %p103 = scmp.eq.s32.totalorder %s21, 0
    %p104 = por %p102, %p103
    %s105 = ssub.s32 %s22, %s34
    %s106 = ssub.s32 %s23, %s30
    %s107 = sor.u32 %s105, %s106
    %p108 = scmp.eq.s32.totalorder %s107, 0
    %s110 = sadd.s32 %s109, 1
    %s111 = scalar_select %p108, %s109, %s110
    %p114 = pneg %p108
    %p115 = scmp.eq.s32.totalorder %s15, 1
    %p116 = por %p114, %p115
    %p117 = scmp.ne.s32.totalorder %s109, %s112
    %p118 = scmp.eq.s32.totalorder %s15, 0
    %p119 = por %p117, %p118
    %p120 = scmp.ne.s32.totalorder %s109, %s112
    %p121 = scmp.eq.s32.totalorder %s20, 1
    %p122 = por %p120, %p121
    %p123 = scmp.ne.s32.totalorder %s112, %s113
    %p124 = scmp.eq.s32.totalorder %s20, 0
    %p125 = por %p123, %p124
    %p126 = scmp.ne.s32.totalorder %s112, %s113
    %p127 = scmp.eq.s32.totalorder %s21, 1
    %p128 = por %p126, %p127
    %p130 = scmp.ne.s32.totalorder %s113, %s129
    %p131 = scmp.eq.s32.totalorder %s21, 0
    %p132 = por %p130, %p131
    %s133 = ssub.s32 %s22, %s34
    %s134 = ssub.s32 %s23, %s30
    %s135 = sor.u32 %s133, %s134
    %p136 = scmp.eq.s32.totalorder %s135, 0
    %s138 = sadd.s32 %s137, 1
    %s139 = scalar_select %p136, %s137, %s138
    %p142 = pneg %p136
    %p143 = scmp.eq.s32.totalorder %s15, 1
    %p144 = por %p142, %p143
    %p145 = scmp.ne.s32.totalorder %s137, %s140
    %p146 = scmp.eq.s32.totalorder %s15, 0
    %p147 = por %p145, %p146
    %p148 = scmp.ne.s32.totalorder %s137, %s140
    %p149 = scmp.eq.s32.totalorder %s20, 1
    %p150 = por %p148, %p149
    %p151 = scmp.ne.s32.totalorder %s140, %s141
    %p152 = scmp.eq.s32.totalorder %s20, 0
    %p153 = por %p151, %p152
    %p154 = scmp.ne.s32.totalorder %s140, %s141
    %p155 = scmp.eq.s32.totalorder %s21, 1
    %p156 = por %p154, %p155
    %p158 = scmp.ne.s32.totalorder %s141, %s157
    %p159 = scmp.eq.s32.totalorder %s21, 0
    %p160 = por %p158, %p159
    %s161 = ssub.s32 %s22, %s34
    %s162 = ssub.s32 %s23, %s30
    %s163 = sor.u32 %s161, %s162
    %p164 = scmp.eq.s32.totalorder %s163, 0
    %s166 = sadd.s32 %s165, 1
    %s167 = scalar_select %p164, %s165, %s166
    %p170 = pneg %p164
    %p171 = scmp.eq.s32.totalorder %s15, 1
    %p172 = por %p170, %p171
    %p173 = scmp.ne.s32.totalorder %s165, %s168
    %p174 = scmp.eq.s32.totalorder %s15, 0
    %p175 = por %p173, %p174
    %p176 = scmp.ne.s32.totalorder %s165, %s168
    %p177 = scmp.eq.s32.totalorder %s20, 1
    %p178 = por %p176, %p177
    %p179 = scmp.ne.s32.totalorder %s168, %s169
    %p180 = scmp.eq.s32.totalorder %s20, 0
    %p181 = por %p179, %p180
    %p182 = scmp.ne.s32.totalorder %s168, %s169
    %p183 = scmp.eq.s32.totalorder %s21, 1
    %p184 = por %p182, %p183
    %p186 = scmp.ne.s32.totalorder %s169, %s185
    %p187 = scmp.eq.s32.totalorder %s21, 0
    %p188 = por %p186, %p187
    %s189 = ssub.s32 %s22, %s34
    %s190 = ssub.s32 %s23, %s30
    %s191 = sor.u32 %s189, %s190
    %p192 = scmp.eq.s32.totalorder %s191, 0
    %s194 = sadd.s32 %s193, 1
    %s195 = scalar_select %p192, %s193, %s194
    %p198 = pneg %p192
    %p199 = scmp.eq.s32.totalorder %s15, 1
    %p200 = por %p198, %p199
    %p201 = scmp.ne.s32.totalorder %s193, %s196
    %p202 = scmp.eq.s32.totalorder %s15, 0
    %p203 = por %p201, %p202
    %p204 = scmp.ne.s32.totalorder %s193, %s196
    %p205 = scmp.eq.s32.totalorder %s20, 1
    %p206 = por %p204, %p205
    %p207 = scmp.ne.s32.totalorder %s196, %s197
    %p208 = scmp.eq.s32.totalorder %s20, 0
    %p209 = por %p207, %p208
    %p210 = scmp.ne.s32.totalorder %s196, %s197
    %p211 = scmp.eq.s32.totalorder %s21, 1
    %p212 = por %p210, %p211
    %p214 = scmp.ne.s32.totalorder %s197, %s213
    %p215 = scmp.eq.s32.totalorder %s21, 0
    %p216 = por %p214, %p215
    %s217 = ssub.s32 %s22, %s34
    %s218 = ssub.s32 %s23, %s30
    %s219 = sor.u32 %s217, %s218
    %p220 = scmp.eq.s32.totalorder %s219, 0
    %s222 = sadd.s32 %s221, 1
    %s223 = scalar_select %p220, %s221, %s222
    %p226 = pneg %p220
    %p227 = scmp.eq.s32.totalorder %s15, 1
    %p228 = por %p226, %p227
    %p229 = scmp.ne.s32.totalorder %s221, %s224
    %p230 = scmp.eq.s32.totalorder %s15, 0
    %p231 = por %p229, %p230
    %p232 = scmp.ne.s32.totalorder %s221, %s224
    %p233 = scmp.eq.s32.totalorder %s20, 1
    %p234 = por %p232, %p233
    %p235 = scmp.ne.s32.totalorder %s224, %s225
    %p236 = scmp.eq.s32.totalorder %s20, 0
    %p237 = por %p235, %p236
    %p238 = scmp.ne.s32.totalorder %s224, %s225
    %p239 = scmp.eq.s32.totalorder %s21, 1
    %p240 = por %p238, %p239
    %p242 = scmp.ne.s32.totalorder %s225, %s241
    %p243 = scmp.eq.s32.totalorder %s21, 0
    %p244 = por %p242, %p243
    %s245 = ssub.s32 %s22, %s34
    %s246 = ssub.s32 %s23, %s30
    %s247 = sor.u32 %s245, %s246
    %p248 = scmp.eq.s32.totalorder %s247, 0
    %s250 = sadd.s32 %s249, 1
    %s251 = scalar_select %p248, %s249, %s250
    %p254 = pneg %p248
    %p255 = scmp.eq.s32.totalorder %s15, 1
    %p256 = por %p254, %p255
    %p257 = scmp.ne.s32.totalorder %s249, %s252
    %p258 = scmp.eq.s32.totalorder %s15, 0
    %p259 = por %p257, %p258
    %p260 = scmp.ne.s32.totalorder %s249, %s252
    %p261 = scmp.eq.s32.totalorder %s20, 1
    %p262 = por %p260, %p261
    %p263 = scmp.ne.s32.totalorder %s252, %s253
    %p264 = scmp.eq.s32.totalorder %s20, 0
    %p265 = por %p263, %p264
    %p266 = scmp.ne.s32.totalorder %s252, %s253
    %p267 = scmp.eq.s32.totalorder %s21, 1
    %p268 = por %p266, %p267
    %p270 = scmp.ne.s32.totalorder %s253, %s269
    %p271 = scmp.eq.s32.totalorder %s21, 0
    %p272 = por %p270, %p271
    %p273 = scmp.le.s32.totalorder 1, %s15
    %p274 = scmp.lt.s32.totalorder %s15, 3
    %p275 = pnand %p273, %p274
    %p276 = pneg %p275
    // Predicated region
    $region9: #{tpu_custom_call.1} parent=5 // pred_check
      _
    $region10: #{tpu_custom_call.1} parent=5 // pred_check_branch
      %278 = sbr.rel (%p275) target = $region12
    $region11: #{tpu_custom_call.1} parent=5 // pred_region
      %s279 = ssub.s32 %s15, 1
      // Predicated region
      $region13: #{tpu_custom_call.1} parent=11 // pred_check
        %p280 = pneg %p76
      $region14: #{tpu_custom_call.1} parent=11 // pred_check_branch
        %282 = sbr.rel (%p280) target = $region16
      $region15: #{tpu_custom_call.1} parent=11 // pred_region
        _
      $region16: #{tpu_custom_call.1} parent=11 // pred_fallthru
        _
      // Predicated region
      $region17: #{tpu_custom_call.1} parent=11 // pred_check
        %p283 = pneg %p97
      $region18: #{tpu_custom_call.1} parent=11 // pred_check_branch
        %285 = sbr.rel (%p283) target = $region20
      $region19: #{tpu_custom_call.1} parent=11 // pred_region
        _
      $region20: #{tpu_custom_call.1} parent=11 // pred_fallthru
        _
    $region12: #{tpu_custom_call.1} parent=5 // pred_fallthru
      _
    %p286 = scmp.lt.s32.totalorder %s15, 2
    // Predicated region
    $region21: #{tpu_custom_call.1} parent=5 // pred_check
      %p287 = pneg %p286
    $region22: #{tpu_custom_call.1} parent=5 // pred_check_branch
      %289 = sbr.rel (%p287) target = $region24
    $region23: #{tpu_custom_call.1} parent=5 // pred_region
      // Predicated region
      $region25: #{tpu_custom_call.1} parent=23 // pred_check
        %p290 = pneg %p49
      $region26: #{tpu_custom_call.1} parent=23 // pred_check_branch
        %292 = sbr.rel (%p290) target = $region28
      $region27: #{tpu_custom_call.1} parent=23 // pred_region
        %s293 = smul.u32 16, %s23
        %p294 = scmp.lt.s32.totalorder %s22, 1
        %s295 = scalar_select %p294, %s22, 1
        %p296 = scmp.lt.s32.totalorder %s293, 15
        %s297 = scalar_select %p296, %s293, 15
        %s298 = smul.addr %s297, 2
        %s299 = smul.addr %s295, 32
        %s300 = sadd.s32 %s298, %s299
        %s301 = smul.addr %s300, 8
        %s302 = scalar_lea.vmem %s0, %s301
        %s303 = smul.u32 16, %s23
      $region28: #{tpu_custom_call.1} parent=23 // pred_fallthru
        _
    $region24: #{tpu_custom_call.1} parent=5 // pred_fallthru
      _
    %p304 = scmp.le.s32.totalorder 1, %s15
    %p305 = scmp.lt.s32.totalorder %s15, 3
    %p306 = pnand %p304, %p305
    %p307 = pneg %p306
    // Predicated region
    $region29: #{tpu_custom_call.1} parent=5 // pred_check
      _
    $region30: #{tpu_custom_call.1} parent=5 // pred_check_branch
      %309 = sbr.rel (%p306) target = $region32
    $region31: #{tpu_custom_call.1} parent=5 // pred_region
      %s310 = ssub.s32 %s15, 1
      %s311 = smul.u32 16, %s25
      %p312 = scmp.lt.s32.totalorder %s24, 1
      %s313 = scalar_select %p312, %s24, 1
      %p314 = scmp.lt.s32.totalorder %s311, 15
      %s315 = scalar_select %p314, %s311, 15
      %s316 = smul.addr %s315, 2
      %s317 = smul.addr %s313, 32
      %s318 = sadd.s32 %s316, %s317
      %s319 = smul.addr %s318, 8
      %s320 = scalar_lea.vmem %s0, %s319
      %p321 = pneg %p55
      %p322 = pneg %p52
      %p323 = pneg %p76
      %p324 = pneg %p73
      %p325 = pneg %p97
      %p326 = pneg %p94
      %p327 = pneg %p125
      %p328 = pneg %p122
      %s329 = smul.u32 16, %s25
      %p330 = scmp.lt.s32.totalorder %s24, 1
      %s331 = scalar_select %p330, %s24, 1
      %p332 = scmp.lt.s32.totalorder %s329, 15
      %s333 = scalar_select %p332, %s329, 15
      %s334 = smul.addr %s333, 2
      %s335 = smul.addr %s331, 32
      %s336 = sadd.s32 %s334, %s335
      %s337 = smul.addr %s336, 4
      %s338 = scalar_lea.vmem %s3, %s337
      %p339 = pneg %p153
      %p340 = pneg %p150
      %s341 = smul.u32 16, %s25
      %p342 = scmp.lt.s32.totalorder %s24, 1
      %s343 = scalar_select %p342, %s24, 1
      %p344 = scmp.lt.s32.totalorder %s341, 15
      %s345 = scalar_select %p344, %s341, 15
      %s346 = smul.addr %s345, 2
      %s347 = smul.addr %s343, 32
      %s348 = sadd.s32 %s346, %s347
      %s349 = smul.addr %s348, 4
      %s350 = scalar_lea.vmem %s4, %s349
      %p351 = pneg %p181
      %p352 = pneg %p178
      %s353 = smul.u32 16, %s25
      %p354 = scmp.lt.s32.totalorder %s24, 1
      %s355 = scalar_select %p354, %s24, 1
      %p356 = scmp.lt.s32.totalorder %s353, 15
      %s357 = scalar_select %p356, %s353, 15
      %s358 = smul.addr %s357, 2
      %s359 = smul.addr %s355, 32
      %s360 = sadd.s32 %s358, %s359
      %s361 = smul.addr %s360, 4
      %s362 = scalar_lea.vmem %s5, %s361
      %p363 = pneg %p209
      %p364 = pneg %p206
      %s365 = smul.u32 2, %s25
      %p366 = scmp.lt.s32.totalorder %s24, 1
      %s367 = scalar_select %p366, %s24, 1
      %p368 = scmp.lt.s32.totalorder %s365, 1
      %s369 = scalar_select %p368, %s365, 1
      %s370 = smul.addr %s367, 32
      %s371 = sadd.s32 %s369, %s370
      %s372 = smul.addr %s371, 4
      %s373 = scalar_lea.vmem %s6, %s372
      %p374 = pneg %p237
      %p375 = pneg %p234
      %s376 = smul.u32 2, %s25
      %p377 = scmp.lt.s32.totalorder %s24, 1
      %s378 = scalar_select %p377, %s24, 1
      %p379 = scmp.lt.s32.totalorder %s376, 1
      %s380 = scalar_select %p379, %s376, 1
      %s381 = smul.addr %s378, 32
      %s382 = sadd.s32 %s380, %s381
      %s383 = smul.addr %s382, 4
      %s384 = scalar_lea.vmem %s7, %s383
      %p385 = pneg %p265
      %p386 = pneg %p262
      %s387 = smul.u32 2, %s25
      %p388 = scmp.lt.s32.totalorder %s24, 1
      %s389 = scalar_select %p388, %s24, 1
      %p390 = scmp.lt.s32.totalorder %s387, 1
      %s391 = scalar_select %p390, %s387, 1
      %s392 = smul.addr %s389, 32
      %s393 = sadd.s32 %s391, %s392
      %s394 = smul.addr %s393, 4
      %s395 = scalar_lea.vmem %s8, %s394
      %s396 = smul.u32 16, %s25
      %p397 = scmp.lt.s32.totalorder %s24, 1
      %s398 = scalar_select %p397, %s24, 1
      %p399 = scmp.lt.s32.totalorder %s396, 15
      %s400 = scalar_select %p399, %s396, 15
      %s401 = smul.addr %s400, 2
      %s402 = smul.addr %s398, 32
      %s403 = sadd.s32 %s401, %s402
      %s404 = smul.addr %s403, 8
      %s405 = scalar_lea.vmem %s0, %s404
      %s406 = smul.u32 16, %s25
      %s407 = smul.u32 16, %s25
      %p408 = scmp.lt.s32.totalorder %s24, 1
      %s409 = scalar_select %p408, %s24, 1
      %p410 = scmp.lt.s32.totalorder %s407, 15
      %s411 = scalar_select %p410, %s407, 15
      %s412 = smul.addr %s411, 2
      %s413 = smul.addr %s409, 32
      %s414 = sadd.s32 %s412, %s413
      %s415 = smul.addr %s414, 4
      %s416 = scalar_lea.vmem %s3, %s415
      %s417 = smul.u32 16, %s25
      %s418 = smul.u32 16, %s25
      %p419 = scmp.lt.s32.totalorder %s24, 1
      %s420 = scalar_select %p419, %s24, 1
      %p421 = scmp.lt.s32.totalorder %s418, 15
      %s422 = scalar_select %p421, %s418, 15
      %s423 = smul.addr %s422, 2
      %s424 = smul.addr %s420, 32
      %s425 = sadd.s32 %s423, %s424
      %s426 = smul.addr %s425, 4
      %s427 = scalar_lea.vmem %s4, %s426
      %s428 = smul.u32 16, %s25
      %s429 = smul.u32 16, %s25
      %p430 = scmp.lt.s32.totalorder %s24, 1
      %s431 = scalar_select %p430, %s24, 1
      %p432 = scmp.lt.s32.totalorder %s429, 15
      %s433 = scalar_select %p432, %s429, 15
      %s434 = smul.addr %s433, 2
      %s435 = smul.addr %s431, 32
      %s436 = sadd.s32 %s434, %s435
      %s437 = smul.addr %s436, 4
      %s438 = scalar_lea.vmem %s5, %s437
      %s439 = smul.u32 16, %s25
      %s440 = smul.u32 2, %s25
      %p441 = scmp.lt.s32.totalorder %s24, 1
      %s442 = scalar_select %p441, %s24, 1
      %p443 = scmp.lt.s32.totalorder %s440, 1
      %s444 = scalar_select %p443, %s440, 1
      %s445 = smul.addr %s442, 32
      %s446 = sadd.s32 %s444, %s445
      %s447 = smul.addr %s446, 4
      %s448 = scalar_lea.vmem %s6, %s447
      %s449 = smul.u32 2, %s25
      %s450 = smul.u32 2, %s25
      %p451 = scmp.lt.s32.totalorder %s24, 1
      %s452 = scalar_select %p451, %s24, 1
      %p453 = scmp.lt.s32.totalorder %s450, 1
      %s454 = scalar_select %p453, %s450, 1
      %s455 = smul.addr %s452, 32
      %s456 = sadd.s32 %s454, %s455
      %s457 = smul.addr %s456, 4
      %s458 = scalar_lea.vmem %s7, %s457
      %s459 = smul.u32 2, %s25
      %s460 = smul.u32 2, %s25
      %p461 = scmp.lt.s32.totalorder %s24, 1
      %s462 = scalar_select %p461, %s24, 1
      %p463 = scmp.lt.s32.totalorder %s460, 1
      %s464 = scalar_select %p463, %s460, 1
      %s465 = smul.addr %s462, 32
      %s466 = sadd.s32 %s464, %s465
      %s467 = smul.addr %s466, 4
      %s468 = scalar_lea.vmem %s8, %s467
      %s469 = smul.u32 2, %s25
      %v471 = vld [vmem:[%s405] sm:$0xff]
      %v472 = vld [vmem:[%s405 + $0x8] sm:$0xff]
      %v473 = vld [vmem:[%s405 + $0x10] sm:$0xff]
      %v474 = vld [vmem:[%s405 + $0x18] sm:$0xff]
      %v475 = vld [vmem:[%s405 + $0x20] sm:$0xff]
      %v476 = vld [vmem:[%s405 + $0x28] sm:$0xff]
      %v477 = vld [vmem:[%s405 + $0x30] sm:$0xff]
      %v478 = vld [vmem:[%s405 + $0x38] sm:$0xff]
      %v479 = vld [vmem:[%s405 + $0x40] sm:$0xff]
      %v480 = vld [vmem:[%s405 + $0x48] sm:$0xff]
      %v481 = vld [vmem:[%s405 + $0x50] sm:$0xff]
      %v482 = vld [vmem:[%s405 + $0x58] sm:$0xff]
      %v483 = vld [vmem:[%s405 + $0x60] sm:$0xff]
      %v484 = vld [vmem:[%s405 + $0x68] sm:$0xff]
      %v485 = vld [vmem:[%s405 + $0x70] sm:$0xff]
      %v486 = vld [vmem:[%s405 + $0x78] sm:$0xff]
      %v487 = vld [vmem:[%s405 + $0x80] sm:$0xff]
      %v488 = vld [vmem:[%s405 + $0x88] sm:$0xff]
      %v489 = vld [vmem:[%s405 + $0x90] sm:$0xff]
      %v490 = vld [vmem:[%s405 + $0x98] sm:$0xff]
      %v491 = vld [vmem:[%s405 + $0xa0] sm:$0xff]
      %v492 = vld [vmem:[%s405 + $0xa8] sm:$0xff]
      %v493 = vld [vmem:[%s405 + $0xb0] sm:$0xff]
      %v494 = vld [vmem:[%s405 + $0xb8] sm:$0xff]
      %v495 = vld [vmem:[%s405 + $0xc0] sm:$0xff]
      %v496 = vld [vmem:[%s405 + $0xc8] sm:$0xff]
      %v497 = vld [vmem:[%s405 + $0xd0] sm:$0xff]
      %v498 = vld [vmem:[%s405 + $0xd8] sm:$0xff]
      %v499 = vld [vmem:[%s405 + $0xe0] sm:$0xff]
      %v500 = vld [vmem:[%s405 + $0xe8] sm:$0xff]
      %v501 = vld [vmem:[%s405 + $0xf0] sm:$0xff]
      %v502 = vld [vmem:[%s405 + $0xf8] sm:$0xff]
      %v503 = vpack.c.bf16 %v472, %v471
      %v504 = vpack.c.bf16 %v474, %v473
      %v505 = vpack.c.bf16 %v476, %v475
      %v506 = vpack.c.bf16 %v478, %v477
      %v507 = vpack.c.bf16 %v480, %v479
      %v508 = vpack.c.bf16 %v482, %v481
      %v509 = vpack.c.bf16 %v484, %v483
      %v510 = vpack.c.bf16 %v486, %v485
      %v511 = vpack.c.bf16 %v488, %v487
      %v512 = vpack.c.bf16 %v490, %v489
      %v513 = vpack.c.bf16 %v492, %v491
      %v514 = vpack.c.bf16 %v494, %v493
      %v515 = vpack.c.bf16 %v496, %v495
      %v516 = vpack.c.bf16 %v498, %v497
      %v517 = vpack.c.bf16 %v500, %v499
      %v518 = vpack.c.bf16 %v502, %v501
      %v519 = vld [vmem:[%s1] sm:$0xff]
      %v520 = vld [vmem:[%s1 + $0x8] sm:$0xf]
      %v521 = vld [vmem:[%s2] sm:$0x7]
      %v523 = vperm.slane %v521, 0
      %v524 = vperm.slane %v521, 1
      %v525 = vperm.slane %v521, 2
      %v531 = vunpack.c.l.b16 %v519
      %v532 = vunpack.c.h.b16 %v519
      %v533 = vunpack.c.l.b16 %v520
      %v534 = vpack.c.b16 %v531, %v531
      %v535 = vpack.c.b16 %v532, %v532
      %v536 = vpack.c.b16 %v533, %v533
      %vm537 = vcmask 64512
      %v539 = vsel %vm537, %v503, 0
      %v542 = vsel %vm537, %v504, 0
      %v545 = vsel %vm537, %v505, 0
      %v548 = vsel %vm537, %v506, 0
      %v551 = vsel %vm537, %v507, 0
      %v554 = vsel %vm537, %v508, 0
      %v557 = vsel %vm537, %v509, 0
      %v560 = vsel %vm537, %v510, 0
      %v563 = vsel %vm537, %v511, 0
      %v566 = vsel %vm537, %v512, 0
      %v569 = vsel %vm537, %v513, 0
      %v572 = vsel %vm537, %v514, 0
      %v575 = vsel %vm537, %v515, 0
      %v578 = vsel %vm537, %v516, 0
      %v581 = vsel %vm537, %v517, 0
      %v584 = vsel %vm537, %v518, 0
      %vm586 = vcmask 1043456
      %v588 = vsel %vm586, %v534, 0
      %v591 = vsel %vm586, %v535, 0
      %v594 = vsel %vm586, %v536, 0
      %596 = vmatpush.bf16.msra.mxu0 0
      %597 = vmatpush.bf16.msra.mxu0 0
      %598 = vmatpush.bf16.msra.mxu0 0
      %599 = vmatpush.bf16.msra.mxu0 0
      %600 = vmatpush.bf16.msra.mxu0 0
      %601 = vmatpush.bf16.msra.mxu0 0
      %602 = vmatpush.bf16.msra.mxu0 0
      %603 = vmatpush.bf16.msra.mxu0 %v588
      %604 = vmatmul.bf16.gmra.mxu0 %v539
      %v605 = vpop.f32.mrf.mxu0
      %v606 = vadd.f32 %v523, %v605
      %v607 = vpop.f32.mrf.mxu0
      %v608 = vadd.f32 %v523, %v607
      %609 = vmatmul.bf16.gmra.mxu0 %v542
      %v610 = vpop.f32.mrf.mxu0
      %v611 = vadd.f32 %v523, %v610
      %v612 = vpop.f32.mrf.mxu0
      %v613 = vadd.f32 %v523, %v612
      %614 = vmatmul.bf16.gmra.mxu0 %v545
      %v615 = vpop.f32.mrf.mxu0
      %v616 = vadd.f32 %v523, %v615
      %v617 = vpop.f32.mrf.mxu0
      %v618 = vadd.f32 %v523, %v617
      %619 = vmatmul.bf16.gmra.mxu0 %v548
      %v620 = vpop.f32.mrf.mxu0
      %v621 = vadd.f32 %v523, %v620
      %v622 = vpop.f32.mrf.mxu0
      %v623 = vadd.f32 %v523, %v622
      %624 = vmatmul.bf16.gmra.mxu0 %v551
      %v625 = vpop.f32.mrf.mxu0
      %v626 = vadd.f32 %v523, %v625
      %v627 = vpop.f32.mrf.mxu0
      %v628 = vadd.f32 %v523, %v627
      %629 = vmatmul.bf16.gmra.mxu0 %v554
      %v630 = vpop.f32.mrf.mxu0
      %v631 = vadd.f32 %v523, %v630
      %v632 = vpop.f32.mrf.mxu0
      %v633 = vadd.f32 %v523, %v632
      %634 = vmatmul.bf16.gmra.mxu0 %v557
      %v635 = vpop.f32.mrf.mxu0
      %v636 = vadd.f32 %v523, %v635
      %v637 = vpop.f32.mrf.mxu0
      %v638 = vadd.f32 %v523, %v637
      %639 = vmatmul.bf16.gmra.mxu0 %v560
      %v640 = vpop.f32.mrf.mxu0
      %v641 = vadd.f32 %v523, %v640
      %v642 = vpop.f32.mrf.mxu0
      %v643 = vadd.f32 %v523, %v642
      %644 = vmatmul.bf16.gmra.mxu0 %v563
      %v645 = vpop.f32.mrf.mxu0
      %v646 = vadd.f32 %v523, %v645
      %v647 = vpop.f32.mrf.mxu0
      %v648 = vadd.f32 %v523, %v647
      %649 = vmatmul.bf16.gmra.mxu0 %v566
      %v650 = vpop.f32.mrf.mxu0
      %v651 = vadd.f32 %v523, %v650
      %v652 = vpop.f32.mrf.mxu0
      %v653 = vadd.f32 %v523, %v652
      %654 = vmatmul.bf16.gmra.mxu0 %v569
      %v655 = vpop.f32.mrf.mxu0
      %v656 = vadd.f32 %v523, %v655
      %v657 = vpop.f32.mrf.mxu0
      %v658 = vadd.f32 %v523, %v657
      %659 = vmatmul.bf16.gmra.mxu0 %v572
      %v660 = vpop.f32.mrf.mxu0
      %v661 = vadd.f32 %v523, %v660
      %v662 = vpop.f32.mrf.mxu0
      %v663 = vadd.f32 %v523, %v662
      %664 = vmatmul.bf16.gmra.mxu0 %v575
      %v665 = vpop.f32.mrf.mxu0
      %v666 = vadd.f32 %v523, %v665
      %v667 = vpop.f32.mrf.mxu0
      %v668 = vadd.f32 %v523, %v667
      %669 = vmatmul.bf16.gmra.mxu0 %v578
      %v670 = vpop.f32.mrf.mxu0
      %v671 = vadd.f32 %v523, %v670
      %v672 = vpop.f32.mrf.mxu0
      %v673 = vadd.f32 %v523, %v672
      %674 = vmatmul.bf16.gmra.mxu0 %v581
      %v675 = vpop.f32.mrf.mxu0
      %v676 = vadd.f32 %v523, %v675
      %v677 = vpop.f32.mrf.mxu0
      %v678 = vadd.f32 %v523, %v677
      %679 = vmatmul.bf16.gmra.mxu0 %v584
      %v680 = vpop.f32.mrf.mxu0
      %v681 = vadd.f32 %v523, %v680
      %v682 = vpop.f32.mrf.mxu0
      %v683 = vadd.f32 %v523, %v682
      %684 = vdwg.mxu0
      %685 = vmatpush.bf16.msra.mxu0 0
      %686 = vmatpush.bf16.msra.mxu0 0
      %687 = vmatpush.bf16.msra.mxu0 0
      %688 = vmatpush.bf16.msra.mxu0 0
      %689 = vmatpush.bf16.msra.mxu0 0
      %690 = vmatpush.bf16.msra.mxu0 0
      %691 = vmatpush.bf16.msra.mxu0 0
      %692 = vmatpush.bf16.msra.mxu0 %v591
      %693 = vmatmul.bf16.gmra.mxu0 %v539
      %v694 = vpop.f32.mrf.mxu0
      %v695 = vadd.f32 %v524, %v694
      %v696 = vpop.f32.mrf.mxu0
      %v697 = vadd.f32 %v524, %v696
      %698 = vmatmul.bf16.gmra.mxu0 %v542
      %v699 = vpop.f32.mrf.mxu0
      %v700 = vadd.f32 %v524, %v699
      %v701 = vpop.f32.mrf.mxu0
      %v702 = vadd.f32 %v524, %v701
      %703 = vmatmul.bf16.gmra.mxu0 %v545
      %v704 = vpop.f32.mrf.mxu0
      %v705 = vadd.f32 %v524, %v704
      %v706 = vpop.f32.mrf.mxu0
      %v707 = vadd.f32 %v524, %v706
      %708 = vmatmul.bf16.gmra.mxu0 %v548
      %v709 = vpop.f32.mrf.mxu0
      %v710 = vadd.f32 %v524, %v709
      %v711 = vpop.f32.mrf.mxu0
      %v712 = vadd.f32 %v524, %v711
      %713 = vmatmul.bf16.gmra.mxu0 %v551
      %v714 = vpop.f32.mrf.mxu0
      %v715 = vadd.f32 %v524, %v714
      %v716 = vpop.f32.mrf.mxu0
      %v717 = vadd.f32 %v524, %v716
      %718 = vmatmul.bf16.gmra.mxu0 %v554
      %v719 = vpop.f32.mrf.mxu0
      %v720 = vadd.f32 %v524, %v719
      %v721 = vpop.f32.mrf.mxu0
      %v722 = vadd.f32 %v524, %v721
      %723 = vmatmul.bf16.gmra.mxu0 %v557
      %v724 = vpop.f32.mrf.mxu0
      %v725 = vadd.f32 %v524, %v724
      %v726 = vpop.f32.mrf.mxu0
      %v727 = vadd.f32 %v524, %v726
      %728 = vmatmul.bf16.gmra.mxu0 %v560
      %v729 = vpop.f32.mrf.mxu0
      %v730 = vadd.f32 %v524, %v729
      %v731 = vpop.f32.mrf.mxu0
      %v732 = vadd.f32 %v524, %v731
      %733 = vmatmul.bf16.gmra.mxu0 %v563
      %v734 = vpop.f32.mrf.mxu0
      %v735 = vadd.f32 %v524, %v734
      %v736 = vpop.f32.mrf.mxu0
      %v737 = vadd.f32 %v524, %v736
      %738 = vmatmul.bf16.gmra.mxu0 %v566
      %v739 = vpop.f32.mrf.mxu0
      %v740 = vadd.f32 %v524, %v739
      %v741 = vpop.f32.mrf.mxu0
      %v742 = vadd.f32 %v524, %v741
      %743 = vmatmul.bf16.gmra.mxu0 %v569
      %v744 = vpop.f32.mrf.mxu0
      %v745 = vadd.f32 %v524, %v744
      %v746 = vpop.f32.mrf.mxu0
      %v747 = vadd.f32 %v524, %v746
      %748 = vmatmul.bf16.gmra.mxu0 %v572
      %v749 = vpop.f32.mrf.mxu0
      %v750 = vadd.f32 %v524, %v749
      %v751 = vpop.f32.mrf.mxu0
      %v752 = vadd.f32 %v524, %v751
      %753 = vmatmul.bf16.gmra.mxu0 %v575
      %v754 = vpop.f32.mrf.mxu0
      %v755 = vadd.f32 %v524, %v754
      %v756 = vpop.f32.mrf.mxu0
      %v757 = vadd.f32 %v524, %v756
      %758 = vmatmul.bf16.gmra.mxu0 %v578
      %v759 = vpop.f32.mrf.mxu0
      %v760 = vadd.f32 %v524, %v759
      %v761 = vpop.f32.mrf.mxu0
      %v762 = vadd.f32 %v524, %v761
      %763 = vmatmul.bf16.gmra.mxu0 %v581
      %v764 = vpop.f32.mrf.mxu0
      %v765 = vadd.f32 %v524, %v764
      %v766 = vpop.f32.mrf.mxu0
      %v767 = vadd.f32 %v524, %v766
      %768 = vmatmul.bf16.gmra.mxu0 %v584
      %v769 = vpop.f32.mrf.mxu0
      %v770 = vadd.f32 %v524, %v769
      %v771 = vpop.f32.mrf.mxu0
      %v772 = vadd.f32 %v524, %v771
      %773 = vdwg.mxu0
      %774 = vmatpush.bf16.msra.mxu0 0
      %775 = vmatpush.bf16.msra.mxu0 0
      %776 = vmatpush.bf16.msra.mxu0 0
      %777 = vmatpush.bf16.msra.mxu0 0
      %778 = vmatpush.bf16.msra.mxu0 0
      %779 = vmatpush.bf16.msra.mxu0 0
      %780 = vmatpush.bf16.msra.mxu0 0
      %781 = vmatpush.bf16.msra.mxu0 %v594
      %782 = vmatmul.bf16.gmra.mxu0 %v539
      %v783 = vpop.f32.mrf.mxu0
      %v784 = vadd.f32 %v525, %v783
      %v785 = vpop.f32.mrf.mxu0
      %v786 = vadd.f32 %v525, %v785
      %787 = vmatmul.bf16.gmra.mxu0 %v542
      %v788 = vpop.f32.mrf.mxu0
      %v789 = vadd.f32 %v525, %v788
      %v790 = vpop.f32.mrf.mxu0
      %v791 = vadd.f32 %v525, %v790
      %792 = vmatmul.bf16.gmra.mxu0 %v545
      %v793 = vpop.f32.mrf.mxu0
      %v794 = vadd.f32 %v525, %v793
      %v795 = vpop.f32.mrf.mxu0
      %v796 = vadd.f32 %v525, %v795
      %797 = vmatmul.bf16.gmra.mxu0 %v548
      %v798 = vpop.f32.mrf.mxu0
      %v799 = vadd.f32 %v525, %v798
      %v800 = vpop.f32.mrf.mxu0
      %v801 = vadd.f32 %v525, %v800
      %802 = vmatmul.bf16.gmra.mxu0 %v551
      %v803 = vpop.f32.mrf.mxu0
      %v804 = vadd.f32 %v525, %v803
      %v805 = vpop.f32.mrf.mxu0
      %v806 = vadd.f32 %v525, %v805
      %807 = vmatmul.bf16.gmra.mxu0 %v554
      %v808 = vpop.f32.mrf.mxu0
      %v809 = vadd.f32 %v525, %v808
      %v810 = vpop.f32.mrf.mxu0
      %v811 = vadd.f32 %v525, %v810
      %812 = vmatmul.bf16.gmra.mxu0 %v557
      %v813 = vpop.f32.mrf.mxu0
      %v814 = vadd.f32 %v525, %v813
      %v815 = vpop.f32.mrf.mxu0
      %v816 = vadd.f32 %v525, %v815
      %817 = vmatmul.bf16.gmra.mxu0 %v560
      %v818 = vpop.f32.mrf.mxu0
      %v819 = vadd.f32 %v525, %v818
      %v820 = vpop.f32.mrf.mxu0
      %v821 = vadd.f32 %v525, %v820
      %822 = vmatmul.bf16.gmra.mxu0 %v563
      %v823 = vpop.f32.mrf.mxu0
      %v824 = vadd.f32 %v525, %v823
      %v825 = vpop.f32.mrf.mxu0
      %v826 = vadd.f32 %v525, %v825
      %827 = vmatmul.bf16.gmra.mxu0 %v566
      %v828 = vpop.f32.mrf.mxu0
      %v829 = vadd.f32 %v525, %v828
      %v830 = vpop.f32.mrf.mxu0
      %v831 = vadd.f32 %v525, %v830
      %832 = vmatmul.bf16.gmra.mxu0 %v569
      %v833 = vpop.f32.mrf.mxu0
      %v834 = vadd.f32 %v525, %v833
      %v835 = vpop.f32.mrf.mxu0
      %v836 = vadd.f32 %v525, %v835
      %837 = vmatmul.bf16.gmra.mxu0 %v572
      %v838 = vpop.f32.mrf.mxu0
      %v839 = vadd.f32 %v525, %v838
      %v840 = vpop.f32.mrf.mxu0
      %v841 = vadd.f32 %v525, %v840
      %842 = vmatmul.bf16.gmra.mxu0 %v575
      %v843 = vpop.f32.mrf.mxu0
      %v844 = vadd.f32 %v525, %v843
      %v845 = vpop.f32.mrf.mxu0
      %v846 = vadd.f32 %v525, %v845
      %847 = vmatmul.bf16.gmra.mxu0 %v578
      %v848 = vpop.f32.mrf.mxu0
      %v849 = vadd.f32 %v525, %v848
      %v850 = vpop.f32.mrf.mxu0
      %v851 = vadd.f32 %v525, %v850
      %852 = vmatmul.bf16.gmra.mxu0 %v581
      %v853 = vpop.f32.mrf.mxu0
      %v854 = vadd.f32 %v525, %v853
      %v855 = vpop.f32.mrf.mxu0
      %v856 = vadd.f32 %v525, %v855
      %857 = vmatmul.bf16.gmra.mxu0 %v584
      %v858 = vpop.f32.mrf.mxu0
      %v859 = vadd.f32 %v525, %v858
      %v860 = vpop.f32.mrf.mxu0
      %v861 = vadd.f32 %v525, %v860
      %862 = vdwg.mxu0
      %v863 = vpack.c.bf16 %v606, %v606
      %v864 = vpack.c.bf16 %v608, %v608
      %v865 = vpack.c.bf16 %v611, %v611
      %v866 = vpack.c.bf16 %v613, %v613
      %v867 = vpack.c.bf16 %v616, %v616
      %v868 = vpack.c.bf16 %v618, %v618
      %v869 = vpack.c.bf16 %v621, %v621
      %v870 = vpack.c.bf16 %v623, %v623
      %v871 = vpack.c.bf16 %v626, %v626
      %v872 = vpack.c.bf16 %v628, %v628
      %v873 = vpack.c.bf16 %v631, %v631
      %v874 = vpack.c.bf16 %v633, %v633
      %v875 = vpack.c.bf16 %v636, %v636
      %v876 = vpack.c.bf16 %v638, %v638
      %v877 = vpack.c.bf16 %v641, %v641
      %v878 = vpack.c.bf16 %v643, %v643
      %v879 = vpack.c.bf16 %v646, %v646
      %v880 = vpack.c.bf16 %v648, %v648
      %v881 = vpack.c.bf16 %v651, %v651
      %v882 = vpack.c.bf16 %v653, %v653
      %v883 = vpack.c.bf16 %v656, %v656
      %v884 = vpack.c.bf16 %v658, %v658
      %v885 = vpack.c.bf16 %v661, %v661
      %v886 = vpack.c.bf16 %v663, %v663
      %v887 = vpack.c.bf16 %v666, %v666
      %v888 = vpack.c.bf16 %v668, %v668
      %v889 = vpack.c.bf16 %v671, %v671
      %v890 = vpack.c.bf16 %v673, %v673
      %v891 = vpack.c.bf16 %v676, %v676
      %v892 = vpack.c.bf16 %v678, %v678
      %v893 = vpack.c.bf16 %v681, %v681
      %v894 = vpack.c.bf16 %v683, %v683
      %vm895 = vcmask 27648
      %896 = vst.msk [vmem:[%s416] sm:$0xf] %vm895, %v863
      %897 = vst.msk [vmem:[%s416 + $0x4] sm:$0xf] %vm895, %v864
      %898 = vst.msk [vmem:[%s416 + $0x8] sm:$0xf] %vm895, %v865
      %899 = vst.msk [vmem:[%s416 + $0xc] sm:$0xf] %vm895, %v866
      %900 = vst.msk [vmem:[%s416 + $0x10] sm:$0xf] %vm895, %v867
      %901 = vst.msk [vmem:[%s416 + $0x14] sm:$0xf] %vm895, %v868
      %902 = vst.msk [vmem:[%s416 + $0x18] sm:$0xf] %vm895, %v869
      %903 = vst.msk [vmem:[%s416 + $0x1c] sm:$0xf] %vm895, %v870
      %904 = vst.msk [vmem:[%s416 + $0x20] sm:$0xf] %vm895, %v871
      %905 = vst.msk [vmem:[%s416 + $0x24] sm:$0xf] %vm895, %v872
      %906 = vst.msk [vmem:[%s416 + $0x28] sm:$0xf] %vm895, %v873
      %907 = vst.msk [vmem:[%s416 + $0x2c] sm:$0xf] %vm895, %v874
      %908 = vst.msk [vmem:[%s416 + $0x30] sm:$0xf] %vm895, %v875
      %909 = vst.msk [vmem:[%s416 + $0x34] sm:$0xf] %vm895, %v876
      %910 = vst.msk [vmem:[%s416 + $0x38] sm:$0xf] %vm895, %v877
      %911 = vst.msk [vmem:[%s416 + $0x3c] sm:$0xf] %vm895, %v878
      %912 = vst.msk [vmem:[%s416 + $0x40] sm:$0xf] %vm895, %v879
      %913 = vst.msk [vmem:[%s416 + $0x44] sm:$0xf] %vm895, %v880
      %914 = vst.msk [vmem:[%s416 + $0x48] sm:$0xf] %vm895, %v881
      %915 = vst.msk [vmem:[%s416 + $0x4c] sm:$0xf] %vm895, %v882
      %916 = vst.msk [vmem:[%s416 + $0x50] sm:$0xf] %vm895, %v883
      %917 = vst.msk [vmem:[%s416 + $0x54] sm:$0xf] %vm895, %v884
      %918 = vst.msk [vmem:[%s416 + $0x58] sm:$0xf] %vm895, %v885
      %919 = vst.msk [vmem:[%s416 + $0x5c] sm:$0xf] %vm895, %v886
      %920 = vst.msk [vmem:[%s416 + $0x60] sm:$0xf] %vm895, %v887
      %921 = vst.msk [vmem:[%s416 + $0x64] sm:$0xf] %vm895, %v888
      %922 = vst.msk [vmem:[%s416 + $0x68] sm:$0xf] %vm895, %v889
      %923 = vst.msk [vmem:[%s416 + $0x6c] sm:$0xf] %vm895, %v890
      %924 = vst.msk [vmem:[%s416 + $0x70] sm:$0xf] %vm895, %v891
      %925 = vst.msk [vmem:[%s416 + $0x74] sm:$0xf] %vm895, %v892
      %926 = vst.msk [vmem:[%s416 + $0x78] sm:$0xf] %vm895, %v893
      %927 = vst.msk [vmem:[%s416 + $0x7c] sm:$0xf] %vm895, %v894
      %v928 = vpack.c.bf16 %v695, %v695
      %v929 = vpack.c.bf16 %v697, %v697
      %v930 = vpack.c.bf16 %v700, %v700
      %v931 = vpack.c.bf16 %v702, %v702
      %v932 = vpack.c.bf16 %v705, %v705
      %v933 = vpack.c.bf16 %v707, %v707
      %v934 = vpack.c.bf16 %v710, %v710
      %v935 = vpack.c.bf16 %v712, %v712
      %v936 = vpack.c.bf16 %v715, %v715
      %v937 = vpack.c.bf16 %v717, %v717
      %v938 = vpack.c.bf16 %v720, %v720
      %v939 = vpack.c.bf16 %v722, %v722
      %v940 = vpack.c.bf16 %v725, %v725
      %v941 = vpack.c.bf16 %v727, %v727
      %v942 = vpack.c.bf16 %v730, %v730
      %v943 = vpack.c.bf16 %v732, %v732
      %v944 = vpack.c.bf16 %v735, %v735
      %v945 = vpack.c.bf16 %v737, %v737
      %v946 = vpack.c.bf16 %v740, %v740
      %v947 = vpack.c.bf16 %v742, %v742
      %v948 = vpack.c.bf16 %v745, %v745
      %v949 = vpack.c.bf16 %v747, %v747
      %v950 = vpack.c.bf16 %v750, %v750
      %v951 = vpack.c.bf16 %v752, %v752
      %v952 = vpack.c.bf16 %v755, %v755
      %v953 = vpack.c.bf16 %v757, %v757
      %v954 = vpack.c.bf16 %v760, %v760
      %v955 = vpack.c.bf16 %v762, %v762
      %v956 = vpack.c.bf16 %v765, %v765
      %v957 = vpack.c.bf16 %v767, %v767
      %v958 = vpack.c.bf16 %v770, %v770
      %v959 = vpack.c.bf16 %v772, %v772
      %960 = vst.msk [vmem:[%s427] sm:$0xf] %vm895, %v928
      %961 = vst.msk [vmem:[%s427 + $0x4] sm:$0xf] %vm895, %v929
      %962 = vst.msk [vmem:[%s427 + $0x8] sm:$0xf] %vm895, %v930
      %963 = vst.msk [vmem:[%s427 + $0xc] sm:$0xf] %vm895, %v931
      %964 = vst.msk [vmem:[%s427 + $0x10] sm:$0xf] %vm895, %v932
      %965 = vst.msk [vmem:[%s427 + $0x14] sm:$0xf] %vm895, %v933
      %966 = vst.msk [vmem:[%s427 + $0x18] sm:$0xf] %vm895, %v934
      %967 = vst.msk [vmem:[%s427 + $0x1c] sm:$0xf] %vm895, %v935
      %968 = vst.msk [vmem:[%s427 + $0x20] sm:$0xf] %vm895, %v936
      %969 = vst.msk [vmem:[%s427 + $0x24] sm:$0xf] %vm895, %v937
      %970 = vst.msk [vmem:[%s427 + $0x28] sm:$0xf] %vm895, %v938
      %971 = vst.msk [vmem:[%s427 + $0x2c] sm:$0xf] %vm895, %v939
      %972 = vst.msk [vmem:[%s427 + $0x30] sm:$0xf] %vm895, %v940
      %973 = vst.msk [vmem:[%s427 + $0x34] sm:$0xf] %vm895, %v941
      %974 = vst.msk [vmem:[%s427 + $0x38] sm:$0xf] %vm895, %v942
      %975 = vst.msk [vmem:[%s427 + $0x3c] sm:$0xf] %vm895, %v943
      %976 = vst.msk [vmem:[%s427 + $0x40] sm:$0xf] %vm895, %v944
      %977 = vst.msk [vmem:[%s427 + $0x44] sm:$0xf] %vm895, %v945
      %978 = vst.msk [vmem:[%s427 + $0x48] sm:$0xf] %vm895, %v946
      %979 = vst.msk [vmem:[%s427 + $0x4c] sm:$0xf] %vm895, %v947
      %980 = vst.msk [vmem:[%s427 + $0x50] sm:$0xf] %vm895, %v948
      %981 = vst.msk [vmem:[%s427 + $0x54] sm:$0xf] %vm895, %v949
      %982 = vst.msk [vmem:[%s427 + $0x58] sm:$0xf] %vm895, %v950
      %983 = vst.msk [vmem:[%s427 + $0x5c] sm:$0xf] %vm895, %v951
      %984 = vst.msk [vmem:[%s427 + $0x60] sm:$0xf] %vm895, %v952
      %985 = vst.msk [vmem:[%s427 + $0x64] sm:$0xf] %vm895, %v953
      %986 = vst.msk [vmem:[%s427 + $0x68] sm:$0xf] %vm895, %v954
      %987 = vst.msk [vmem:[%s427 + $0x6c] sm:$0xf] %vm895, %v955
      %988 = vst.msk [vmem:[%s427 + $0x70] sm:$0xf] %vm895, %v956
      %989 = vst.msk [vmem:[%s427 + $0x74] sm:$0xf] %vm895, %v957
      %990 = vst.msk [vmem:[%s427 + $0x78] sm:$0xf] %vm895, %v958
      %991 = vst.msk [vmem:[%s427 + $0x7c] sm:$0xf] %vm895, %v959
      %v992 = vpack.c.bf16 %v784, %v784
      %v993 = vpack.c.bf16 %v786, %v786
      %v994 = vpack.c.bf16 %v789, %v789
      %v995 = vpack.c.bf16 %v791, %v791
      %v996 = vpack.c.bf16 %v794, %v794
      %v997 = vpack.c.bf16 %v796, %v796
      %v998 = vpack.c.bf16 %v799, %v799
      %v999 = vpack.c.bf16 %v801, %v801
      %v1000 = vpack.c.bf16 %v804, %v804
      %v1001 = vpack.c.bf16 %v806, %v806
      %v1002 = vpack.c.bf16 %v809, %v809
      %v1003 = vpack.c.bf16 %v811, %v811
      %v1004 = vpack.c.bf16 %v814, %v814
      %v1005 = vpack.c.bf16 %v816, %v816
      %v1006 = vpack.c.bf16 %v819, %v819
      %v1007 = vpack.c.bf16 %v821, %v821
      %v1008 = vpack.c.bf16 %v824, %v824
      %v1009 = vpack.c.bf16 %v826, %v826
      %v1010 = vpack.c.bf16 %v829, %v829
      %v1011 = vpack.c.bf16 %v831, %v831
      %v1012 = vpack.c.bf16 %v834, %v834
      %v1013 = vpack.c.bf16 %v836, %v836
      %v1014 = vpack.c.bf16 %v839, %v839
      %v1015 = vpack.c.bf16 %v841, %v841
      %v1016 = vpack.c.bf16 %v844, %v844
      %v1017 = vpack.c.bf16 %v846, %v846
      %v1018 = vpack.c.bf16 %v849, %v849
      %v1019 = vpack.c.bf16 %v851, %v851
      %v1020 = vpack.c.bf16 %v854, %v854
      %v1021 = vpack.c.bf16 %v856, %v856
      %v1022 = vpack.c.bf16 %v859, %v859
      %v1023 = vpack.c.bf16 %v861, %v861
      %vm1024 = vcmask 68608
      %1025 = vst.msk [vmem:[%s438] sm:$0xf] %vm1024, %v992
      %1026 = vst.msk [vmem:[%s438 + $0x4] sm:$0xf] %vm1024, %v993
      %1027 = vst.msk [vmem:[%s438 + $0x8] sm:$0xf] %vm1024, %v994
      %1028 = vst.msk [vmem:[%s438 + $0xc] sm:$0xf] %vm1024, %v995
      %1029 = vst.msk [vmem:[%s438 + $0x10] sm:$0xf] %vm1024, %v996
      %1030 = vst.msk [vmem:[%s438 + $0x14] sm:$0xf] %vm1024, %v997
      %1031 = vst.msk [vmem:[%s438 + $0x18] sm:$0xf] %vm1024, %v998
      %1032 = vst.msk [vmem:[%s438 + $0x1c] sm:$0xf] %vm1024, %v999
      %1033 = vst.msk [vmem:[%s438 + $0x20] sm:$0xf] %vm1024, %v1000
      %1034 = vst.msk [vmem:[%s438 + $0x24] sm:$0xf] %vm1024, %v1001
      %1035 = vst.msk [vmem:[%s438 + $0x28] sm:$0xf] %vm1024, %v1002
      %1036 = vst.msk [vmem:[%s438 + $0x2c] sm:$0xf] %vm1024, %v1003
      %1037 = vst.msk [vmem:[%s438 + $0x30] sm:$0xf] %vm1024, %v1004
      %1038 = vst.msk [vmem:[%s438 + $0x34] sm:$0xf] %vm1024, %v1005
      %1039 = vst.msk [vmem:[%s438 + $0x38] sm:$0xf] %vm1024, %v1006
      %1040 = vst.msk [vmem:[%s438 + $0x3c] sm:$0xf] %vm1024, %v1007
      %1041 = vst.msk [vmem:[%s438 + $0x40] sm:$0xf] %vm1024, %v1008
      %1042 = vst.msk [vmem:[%s438 + $0x44] sm:$0xf] %vm1024, %v1009
      %1043 = vst.msk [vmem:[%s438 + $0x48] sm:$0xf] %vm1024, %v1010
      %1044 = vst.msk [vmem:[%s438 + $0x4c] sm:$0xf] %vm1024, %v1011
      %1045 = vst.msk [vmem:[%s438 + $0x50] sm:$0xf] %vm1024, %v1012
      %1046 = vst.msk [vmem:[%s438 + $0x54] sm:$0xf] %vm1024, %v1013
      %1047 = vst.msk [vmem:[%s438 + $0x58] sm:$0xf] %vm1024, %v1014
      %1048 = vst.msk [vmem:[%s438 + $0x5c] sm:$0xf] %vm1024, %v1015
      %1049 = vst.msk [vmem:[%s438 + $0x60] sm:$0xf] %vm1024, %v1016
      %1050 = vst.msk [vmem:[%s438 + $0x64] sm:$0xf] %vm1024, %v1017
      %1051 = vst.msk [vmem:[%s438 + $0x68] sm:$0xf] %vm1024, %v1018
      %1052 = vst.msk [vmem:[%s438 + $0x6c] sm:$0xf] %vm1024, %v1019
      %1053 = vst.msk [vmem:[%s438 + $0x70] sm:$0xf] %vm1024, %v1020
      %1054 = vst.msk [vmem:[%s438 + $0x74] sm:$0xf] %vm1024, %v1021
      %1055 = vst.msk [vmem:[%s438 + $0x78] sm:$0xf] %vm1024, %v1022
      %1056 = vst.msk [vmem:[%s438 + $0x7c] sm:$0xf] %vm1024, %v1023
      %v1057 = vrot.slane %v616, 4
      %vm1058 = vcmask 1047556
      %v1059 = vsel %vm1058, %v1057, %v606
      %v1060 = vrot.slane %v606, 4
      %v1061 = vsel %vm1058, %v616, %v1060
      %v1063 = vunpack.c.l.s4 1983009808
      %v1064 = vunpack.c.0.s8 %v1063
      %v1065 = vperm.slane %v1059, %v1064
      %v1067 = vunpack.c.l.s4 1983009808
      %v1068 = vunpack.c.0.s8 %v1067
      %v1069 = vperm.slane %v1061, %v1068
      %v1070 = vrot.slane %v621, 4
      %v1071 = vsel %vm1058, %v1070, %v611
      %v1072 = vrot.slane %v611, 4
      %v1073 = vsel %vm1058, %v621, %v1072
      %v1075 = vunpack.c.l.s4 1983009808
      %v1076 = vunpack.c.0.s8 %v1075
      %v1077 = vperm.slane %v1071, %v1076
      %v1079 = vunpack.c.l.s4 1983009808
      %v1080 = vunpack.c.0.s8 %v1079
      %v1081 = vperm.slane %v1073, %v1080
      %v1082 = vrot.slane %v636, 4
      %v1083 = vsel %vm1058, %v1082, %v626
      %v1084 = vrot.slane %v626, 4
      %v1085 = vsel %vm1058, %v636, %v1084
      %v1087 = vunpack.c.l.s4 1983009808
      %v1088 = vunpack.c.0.s8 %v1087
      %v1089 = vperm.slane %v1083, %v1088
      %v1091 = vunpack.c.l.s4 1983009808
      %v1092 = vunpack.c.0.s8 %v1091
      %v1093 = vperm.slane %v1085, %v1092
      %v1094 = vrot.slane %v641, 4
      %v1095 = vsel %vm1058, %v1094, %v631
      %v1096 = vrot.slane %v631, 4
      %v1097 = vsel %vm1058, %v641, %v1096
      %v1099 = vunpack.c.l.s4 1983009808
      %v1100 = vunpack.c.0.s8 %v1099
      %v1101 = vperm.slane %v1095, %v1100
      %v1103 = vunpack.c.l.s4 1983009808
      %v1104 = vunpack.c.0.s8 %v1103
      %v1105 = vperm.slane %v1097, %v1104
      %v1106 = vrot.slane %v1077, 4
      %v1107 = vsel %vm1058, %v1106, %v1065
      %v1108 = vrot.slane %v1065, 4
      %v1109 = vsel %vm1058, %v1077, %v1108
      %v1111 = vunpack.c.l.s4 1934713408
      %v1112 = vunpack.c.0.s8 %v1111
      %v1113 = vperm.slane %v1107, %v1112
      %v1115 = vunpack.c.l.s4 1934713408
      %v1116 = vunpack.c.0.s8 %v1115
      %v1117 = vperm.slane %v1109, %v1116
      %v1118 = vrot.slane %v1081, 4
      %v1119 = vsel %vm1058, %v1118, %v1069
      %v1120 = vrot.slane %v1069, 4
      %v1121 = vsel %vm1058, %v1081, %v1120
      %v1123 = vunpack.c.l.s4 1934713408
      %v1124 = vunpack.c.0.s8 %v1123
      %v1125 = vperm.slane %v1119, %v1124
      %v1127 = vunpack.c.l.s4 1934713408
      %v1128 = vunpack.c.0.s8 %v1127
      %v1129 = vperm.slane %v1121, %v1128
      %v1130 = vrot.slane %v1101, 4
      %v1131 = vsel %vm1058, %v1130, %v1089
      %v1132 = vrot.slane %v1089, 4
      %v1133 = vsel %vm1058, %v1101, %v1132
      %v1135 = vunpack.c.l.s4 1934713408
      %v1136 = vunpack.c.0.s8 %v1135
      %v1137 = vperm.slane %v1131, %v1136
      %v1139 = vunpack.c.l.s4 1934713408
      %v1140 = vunpack.c.0.s8 %v1139
      %v1141 = vperm.slane %v1133, %v1140
      %v1142 = vrot.slane %v1105, 4
      %v1143 = vsel %vm1058, %v1142, %v1093
      %v1144 = vrot.slane %v1093, 4
      %v1145 = vsel %vm1058, %v1105, %v1144
      %v1147 = vunpack.c.l.s4 1934713408
      %v1148 = vunpack.c.0.s8 %v1147
      %v1149 = vperm.slane %v1143, %v1148
      %v1151 = vunpack.c.l.s4 1934713408
      %v1152 = vunpack.c.0.s8 %v1151
      %v1153 = vperm.slane %v1145, %v1152
      %v1154 = vrot.slane %v1137, 4
      %v1155 = vsel %vm1058, %v1154, %v1113
      %v1156 = vrot.slane %v1113, 4
      %v1157 = vsel %vm1058, %v1137, %v1156
      %v1158 = vrot.slane %v1141, 4
      %v1159 = vsel %vm1058, %v1158, %v1117
      %v1160 = vrot.slane %v1117, 4
      %v1161 = vsel %vm1058, %v1141, %v1160
      %v1162 = vrot.slane %v1149, 4
      %v1163 = vsel %vm1058, %v1162, %v1125
      %v1164 = vrot.slane %v1125, 4
      %v1165 = vsel %vm1058, %v1149, %v1164
      %v1166 = vrot.slane %v1153, 4
      %v1167 = vsel %vm1058, %v1166, %v1129
      %v1168 = vrot.slane %v1129, 4
      %v1169 = vsel %vm1058, %v1153, %v1168
      %v1170 = vrot.slane %v656, 4
      %v1171 = vsel %vm1058, %v1170, %v646
      %v1172 = vrot.slane %v646, 4
      %v1173 = vsel %vm1058, %v656, %v1172
      %v1175 = vunpack.c.l.s4 1983009808
      %v1176 = vunpack.c.0.s8 %v1175
      %v1177 = vperm.slane %v1171, %v1176
      %v1179 = vunpack.c.l.s4 1983009808
      %v1180 = vunpack.c.0.s8 %v1179
      %v1181 = vperm.slane %v1173, %v1180
      %v1182 = vrot.slane %v661, 4
      %v1183 = vsel %vm1058, %v1182, %v651
      %v1184 = vrot.slane %v651, 4
      %v1185 = vsel %vm1058, %v661, %v1184
      %v1187 = vunpack.c.l.s4 1983009808
      %v1188 = vunpack.c.0.s8 %v1187
      %v1189 = vperm.slane %v1183, %v1188
      %v1191 = vunpack.c.l.s4 1983009808
      %v1192 = vunpack.c.0.s8 %v1191
      %v1193 = vperm.slane %v1185, %v1192
      %v1194 = vrot.slane %v676, 4
      %v1195 = vsel %vm1058, %v1194, %v666
      %v1196 = vrot.slane %v666, 4
      %v1197 = vsel %vm1058, %v676, %v1196
      %v1199 = vunpack.c.l.s4 1983009808
      %v1200 = vunpack.c.0.s8 %v1199
      %v1201 = vperm.slane %v1195, %v1200
      %v1203 = vunpack.c.l.s4 1983009808
      %v1204 = vunpack.c.0.s8 %v1203
      %v1205 = vperm.slane %v1197, %v1204
      %v1206 = vrot.slane %v681, 4
      %v1207 = vsel %vm1058, %v1206, %v671
      %v1208 = vrot.slane %v671, 4
      %v1209 = vsel %vm1058, %v681, %v1208
      %v1211 = vunpack.c.l.s4 1983009808
      %v1212 = vunpack.c.0.s8 %v1211
      %v1213 = vperm.slane %v1207, %v1212
      %v1215 = vunpack.c.l.s4 1983009808
      %v1216 = vunpack.c.0.s8 %v1215
      %v1217 = vperm.slane %v1209, %v1216
      %v1218 = vrot.slane %v1189, 4
      %v1219 = vsel %vm1058, %v1218, %v1177
      %v1220 = vrot.slane %v1177, 4
      %v1221 = vsel %vm1058, %v1189, %v1220
      %v1223 = vunpack.c.l.s4 1934713408
      %v1224 = vunpack.c.0.s8 %v1223
      %v1225 = vperm.slane %v1219, %v1224
      %v1227 = vunpack.c.l.s4 1934713408
      %v1228 = vunpack.c.0.s8 %v1227
      %v1229 = vperm.slane %v1221, %v1228
      %v1230 = vrot.slane %v1193, 4
      %v1231 = vsel %vm1058, %v1230, %v1181
      %v1232 = vrot.slane %v1181, 4
      %v1233 = vsel %vm1058, %v1193, %v1232
      %v1235 = vunpack.c.l.s4 1934713408
      %v1236 = vunpack.c.0.s8 %v1235
      %v1237 = vperm.slane %v1231, %v1236
      %v1239 = vunpack.c.l.s4 1934713408
      %v1240 = vunpack.c.0.s8 %v1239
      %v1241 = vperm.slane %v1233, %v1240
      %v1242 = vrot.slane %v1213, 4
      %v1243 = vsel %vm1058, %v1242, %v1201
      %v1244 = vrot.slane %v1201, 4
      %v1245 = vsel %vm1058, %v1213, %v1244
      %v1247 = vunpack.c.l.s4 1934713408
      %v1248 = vunpack.c.0.s8 %v1247
      %v1249 = vperm.slane %v1243, %v1248
      %v1251 = vunpack.c.l.s4 1934713408
      %v1252 = vunpack.c.0.s8 %v1251
      %v1253 = vperm.slane %v1245, %v1252
      %v1254 = vrot.slane %v1217, 4
      %v1255 = vsel %vm1058, %v1254, %v1205
      %v1256 = vrot.slane %v1205, 4
      %v1257 = vsel %vm1058, %v1217, %v1256
      %v1259 = vunpack.c.l.s4 1934713408
      %v1260 = vunpack.c.0.s8 %v1259
      %v1261 = vperm.slane %v1255, %v1260
      %v1263 = vunpack.c.l.s4 1934713408
      %v1264 = vunpack.c.0.s8 %v1263
      %v1265 = vperm.slane %v1257, %v1264
      %v1266 = vrot.slane %v1249, 4
      %v1267 = vsel %vm1058, %v1266, %v1225
      %v1268 = vrot.slane %v1225, 4
      %v1269 = vsel %vm1058, %v1249, %v1268
      %v1270 = vrot.slane %v1253, 4
      %v1271 = vsel %vm1058, %v1270, %v1229
      %v1272 = vrot.slane %v1229, 4
      %v1273 = vsel %vm1058, %v1253, %v1272
      %v1274 = vrot.slane %v1261, 4
      %v1275 = vsel %vm1058, %v1274, %v1237
      %v1276 = vrot.slane %v1237, 4
      %v1277 = vsel %vm1058, %v1261, %v1276
      %v1278 = vrot.slane %v1265, 4
      %v1279 = vsel %vm1058, %v1278, %v1241
      %v1280 = vrot.slane %v1241, 4
      %v1281 = vsel %vm1058, %v1265, %v1280
      %v1282 = vrot.slane %v618, 4
      %v1283 = vsel %vm1058, %v1282, %v608
      %v1284 = vrot.slane %v608, 4
      %v1285 = vsel %vm1058, %v618, %v1284
      %v1287 = vunpack.c.l.s4 1983009808
      %v1288 = vunpack.c.0.s8 %v1287
      %v1289 = vperm.slane %v1283, %v1288
      %v1291 = vunpack.c.l.s4 1983009808
      %v1292 = vunpack.c.0.s8 %v1291
      %v1293 = vperm.slane %v1285, %v1292
      %v1294 = vrot.slane %v623, 4
      %v1295 = vsel %vm1058, %v1294, %v613
      %v1296 = vrot.slane %v613, 4
      %v1297 = vsel %vm1058, %v623, %v1296
      %v1299 = vunpack.c.l.s4 1983009808
      %v1300 = vunpack.c.0.s8 %v1299
      %v1301 = vperm.slane %v1295, %v1300
      %v1303 = vunpack.c.l.s4 1983009808
      %v1304 = vunpack.c.0.s8 %v1303
      %v1305 = vperm.slane %v1297, %v1304
      %v1306 = vrot.slane %v638, 4
      %v1307 = vsel %vm1058, %v1306, %v628
      %v1308 = vrot.slane %v628, 4
      %v1309 = vsel %vm1058, %v638, %v1308
      %v1311 = vunpack.c.l.s4 1983009808
      %v1312 = vunpack.c.0.s8 %v1311
      %v1313 = vperm.slane %v1307, %v1312
      %v1315 = vunpack.c.l.s4 1983009808
      %v1316 = vunpack.c.0.s8 %v1315
      %v1317 = vperm.slane %v1309, %v1316
      %v1318 = vrot.slane %v643, 4
      %v1319 = vsel %vm1058, %v1318, %v633
      %v1320 = vrot.slane %v633, 4
      %v1321 = vsel %vm1058, %v643, %v1320
      %v1323 = vunpack.c.l.s4 1983009808
      %v1324 = vunpack.c.0.s8 %v1323
      %v1325 = vperm.slane %v1319, %v1324
      %v1327 = vunpack.c.l.s4 1983009808
      %v1328 = vunpack.c.0.s8 %v1327
      %v1329 = vperm.slane %v1321, %v1328
      %v1330 = vrot.slane %v1301, 4
      %v1331 = vsel %vm1058, %v1330, %v1289
      %v1332 = vrot.slane %v1289, 4
      %v1333 = vsel %vm1058, %v1301, %v1332
      %v1335 = vunpack.c.l.s4 1934713408
      %v1336 = vunpack.c.0.s8 %v1335
      %v1337 = vperm.slane %v1331, %v1336
      %v1339 = vunpack.c.l.s4 1934713408
      %v1340 = vunpack.c.0.s8 %v1339
      %v1341 = vperm.slane %v1333, %v1340
      %v1342 = vrot.slane %v1305, 4
      %v1343 = vsel %vm1058, %v1342, %v1293
      %v1344 = vrot.slane %v1293, 4
      %v1345 = vsel %vm1058, %v1305, %v1344
      %v1347 = vunpack.c.l.s4 1934713408
      %v1348 = vunpack.c.0.s8 %v1347
      %v1349 = vperm.slane %v1343, %v1348
      %v1351 = vunpack.c.l.s4 1934713408
      %v1352 = vunpack.c.0.s8 %v1351
      %v1353 = vperm.slane %v1345, %v1352
      %v1354 = vrot.slane %v1325, 4
      %v1355 = vsel %vm1058, %v1354, %v1313
      %v1356 = vrot.slane %v1313, 4
      %v1357 = vsel %vm1058, %v1325, %v1356
      %v1359 = vunpack.c.l.s4 1934713408
      %v1360 = vunpack.c.0.s8 %v1359
      %v1361 = vperm.slane %v1355, %v1360
      %v1363 = vunpack.c.l.s4 1934713408
      %v1364 = vunpack.c.0.s8 %v1363
      %v1365 = vperm.slane %v1357, %v1364
      %v1366 = vrot.slane %v1329, 4
      %v1367 = vsel %vm1058, %v1366, %v1317
      %v1368 = vrot.slane %v1317, 4
      %v1369 = vsel %vm1058, %v1329, %v1368
      %v1371 = vunpack.c.l.s4 1934713408
      %v1372 = vunpack.c.0.s8 %v1371
      %v1373 = vperm.slane %v1367, %v1372
      %v1375 = vunpack.c.l.s4 1934713408
      %v1376 = vunpack.c.0.s8 %v1375
      %v1377 = vperm.slane %v1369, %v1376
      %v1378 = vrot.slane %v1361, 4
      %v1379 = vsel %vm1058, %v1378, %v1337
      %v1380 = vrot.slane %v1337, 4
      %v1381 = vsel %vm1058, %v1361, %v1380
      %v1382 = vrot.slane %v1365, 4
      %v1383 = vsel %vm1058, %v1382, %v1341
      %v1384 = vrot.slane %v1341, 4
      %v1385 = vsel %vm1058, %v1365, %v1384
      %v1386 = vrot.slane %v1373, 4
      %v1387 = vsel %vm1058, %v1386, %v1349
      %v1388 = vrot.slane %v1349, 4
      %v1389 = vsel %vm1058, %v1373, %v1388
      %v1390 = vrot.slane %v1377, 4
      %v1391 = vsel %vm1058, %v1390, %v1353
      %v1392 = vrot.slane %v1353, 4
      %v1393 = vsel %vm1058, %v1377, %v1392
      %v1394 = vrot.slane %v658, 4
      %v1395 = vsel %vm1058, %v1394, %v648
      %v1396 = vrot.slane %v648, 4
      %v1397 = vsel %vm1058, %v658, %v1396
      %v1399 = vunpack.c.l.s4 1983009808
      %v1400 = vunpack.c.0.s8 %v1399
      %v1401 = vperm.slane %v1395, %v1400
      %v1403 = vunpack.c.l.s4 1983009808
      %v1404 = vunpack.c.0.s8 %v1403
      %v1405 = vperm.slane %v1397, %v1404
      %v1406 = vrot.slane %v663, 4
      %v1407 = vsel %vm1058, %v1406, %v653
      %v1408 = vrot.slane %v653, 4
      %v1409 = vsel %vm1058, %v663, %v1408
      %v1411 = vunpack.c.l.s4 1983009808
      %v1412 = vunpack.c.0.s8 %v1411
      %v1413 = vperm.slane %v1407, %v1412
      %v1415 = vunpack.c.l.s4 1983009808
      %v1416 = vunpack.c.0.s8 %v1415
      %v1417 = vperm.slane %v1409, %v1416
      %v1418 = vrot.slane %v678, 4
      %v1419 = vsel %vm1058, %v1418, %v668
      %v1420 = vrot.slane %v668, 4
      %v1421 = vsel %vm1058, %v678, %v1420
      %v1423 = vunpack.c.l.s4 1983009808
      %v1424 = vunpack.c.0.s8 %v1423
      %v1425 = vperm.slane %v1419, %v1424
      %v1427 = vunpack.c.l.s4 1983009808
      %v1428 = vunpack.c.0.s8 %v1427
      %v1429 = vperm.slane %v1421, %v1428
      %v1430 = vrot.slane %v683, 4
      %v1431 = vsel %vm1058, %v1430, %v673
      %v1432 = vrot.slane %v673, 4
      %v1433 = vsel %vm1058, %v683, %v1432
      %v1435 = vunpack.c.l.s4 1983009808
      %v1436 = vunpack.c.0.s8 %v1435
      %v1437 = vperm.slane %v1431, %v1436
      %v1439 = vunpack.c.l.s4 1983009808
      %v1440 = vunpack.c.0.s8 %v1439
      %v1441 = vperm.slane %v1433, %v1440
      %v1442 = vrot.slane %v1413, 4
      %v1443 = vsel %vm1058, %v1442, %v1401
      %v1444 = vrot.slane %v1401, 4
      %v1445 = vsel %vm1058, %v1413, %v1444
      %v1447 = vunpack.c.l.s4 1934713408
      %v1448 = vunpack.c.0.s8 %v1447
      %v1449 = vperm.slane %v1443, %v1448
      %v1451 = vunpack.c.l.s4 1934713408
      %v1452 = vunpack.c.0.s8 %v1451
      %v1453 = vperm.slane %v1445, %v1452
      %v1454 = vrot.slane %v1417, 4
      %v1455 = vsel %vm1058, %v1454, %v1405
      %v1456 = vrot.slane %v1405, 4
      %v1457 = vsel %vm1058, %v1417, %v1456
      %v1459 = vunpack.c.l.s4 1934713408
      %v1460 = vunpack.c.0.s8 %v1459
      %v1461 = vperm.slane %v1455, %v1460
      %v1463 = vunpack.c.l.s4 1934713408
      %v1464 = vunpack.c.0.s8 %v1463
      %v1465 = vperm.slane %v1457, %v1464
      %v1466 = vrot.slane %v1437, 4
      %v1467 = vsel %vm1058, %v1466, %v1425
      %v1468 = vrot.slane %v1425, 4
      %v1469 = vsel %vm1058, %v1437, %v1468
      %v1471 = vunpack.c.l.s4 1934713408
      %v1472 = vunpack.c.0.s8 %v1471
      %v1473 = vperm.slane %v1467, %v1472
      %v1475 = vunpack.c.l.s4 1934713408
      %v1476 = vunpack.c.0.s8 %v1475
      %v1477 = vperm.slane %v1469, %v1476
      %v1478 = vrot.slane %v1441, 4
      %v1479 = vsel %vm1058, %v1478, %v1429
      %v1480 = vrot.slane %v1429, 4
      %v1481 = vsel %vm1058, %v1441, %v1480
      %v1483 = vunpack.c.l.s4 1934713408
      %v1484 = vunpack.c.0.s8 %v1483
      %v1485 = vperm.slane %v1479, %v1484
      %v1487 = vunpack.c.l.s4 1934713408
      %v1488 = vunpack.c.0.s8 %v1487
      %v1489 = vperm.slane %v1481, %v1488
      %v1490 = vrot.slane %v1473, 4
      %v1491 = vsel %vm1058, %v1490, %v1449
      %v1492 = vrot.slane %v1449, 4
      %v1493 = vsel %vm1058, %v1473, %v1492
      %v1494 = vrot.slane %v1477, 4
      %v1495 = vsel %vm1058, %v1494, %v1453
      %v1496 = vrot.slane %v1453, 4
      %v1497 = vsel %vm1058, %v1477, %v1496
      %v1498 = vrot.slane %v1485, 4
      %v1499 = vsel %vm1058, %v1498, %v1461
      %v1500 = vrot.slane %v1461, 4
      %v1501 = vsel %vm1058, %v1485, %v1500
      %v1502 = vrot.slane %v1489, 4
      %v1503 = vsel %vm1058, %v1502, %v1465
      %v1504 = vrot.slane %v1465, 4
      %v1505 = vsel %vm1058, %v1489, %v1504
      %v1506 = vpack.c.bf16 %v1155, %v1155
      %v1507 = vpack.c.bf16 %v1267, %v1267
      %v1508 = vpack.c.bf16 %v1157, %v1157
      %v1509 = vpack.c.bf16 %v1269, %v1269
      %v1510 = vpack.c.bf16 %v1159, %v1159
      %v1511 = vpack.c.bf16 %v1271, %v1271
      %v1512 = vpack.c.bf16 %v1161, %v1161
      %v1513 = vpack.c.bf16 %v1273, %v1273
      %v1514 = vpack.c.bf16 %v1163, %v1163
      %v1515 = vpack.c.bf16 %v1275, %v1275
      %v1516 = vpack.c.bf16 %v1165, %v1165
      %v1517 = vpack.c.bf16 %v1277, %v1277
      %v1518 = vpack.c.bf16 %v1167, %v1167
      %v1519 = vpack.c.bf16 %v1279, %v1279
      %v1520 = vpack.c.bf16 %v1169, %v1169
      %v1521 = vpack.c.bf16 %v1281, %v1281
      %v1522 = vpack.c.bf16 %v1379, %v1379
      %v1523 = vpack.c.bf16 %v1491, %v1491
      %v1524 = vpack.c.bf16 %v1381, %v1381
      %v1525 = vpack.c.bf16 %v1493, %v1493
      %v1526 = vpack.c.bf16 %v1383, %v1383
      %v1527 = vpack.c.bf16 %v1495, %v1495
      %v1528 = vpack.c.bf16 %v1385, %v1385
      %v1529 = vpack.c.bf16 %v1497, %v1497
      %v1530 = vpack.c.bf16 %v1387, %v1387
      %v1531 = vpack.c.bf16 %v1499, %v1499
      %v1532 = vpack.c.bf16 %v1389, %v1389
      %v1533 = vpack.c.bf16 %v1501, %v1501
      %v1534 = vpack.c.bf16 %v1391, %v1391
      %v1535 = vpack.c.bf16 %v1503, %v1503
      %v1536 = vpack.c.bf16 %v1393, %v1393
      %v1537 = vpack.c.bf16 %v1505, %v1505
      %1538 = vst.msk [vmem:[%s448] sm:$0xf] %vm895, %v1506
      %1539 = vst.msk [vmem:[%s448 + $0x4] sm:$0xf] %vm895, %v1507
      %1540 = vst.msk [vmem:[%s448 + $0x8] sm:$0xf] %vm895, %v1508
      %1541 = vst.msk [vmem:[%s448 + $0xc] sm:$0xf] %vm895, %v1509
      %1542 = vst.msk [vmem:[%s448 + $0x10] sm:$0xf] %vm895, %v1510
      %1543 = vst.msk [vmem:[%s448 + $0x14] sm:$0xf] %vm895, %v1511
      %1544 = vst.msk [vmem:[%s448 + $0x18] sm:$0xf] %vm895, %v1512
      %1545 = vst.msk [vmem:[%s448 + $0x1c] sm:$0xf] %vm895, %v1513
      %1546 = vst.msk [vmem:[%s448 + $0x20] sm:$0xf] %vm895, %v1514
      %1547 = vst.msk [vmem:[%s448 + $0x24] sm:$0xf] %vm895, %v1515
      %1548 = vst.msk [vmem:[%s448 + $0x28] sm:$0xf] %vm895, %v1516
      %1549 = vst.msk [vmem:[%s448 + $0x2c] sm:$0xf] %vm895, %v1517
      %1550 = vst.msk [vmem:[%s448 + $0x30] sm:$0xf] %vm895, %v1518
      %1551 = vst.msk [vmem:[%s448 + $0x34] sm:$0xf] %vm895, %v1519
      %1552 = vst.msk [vmem:[%s448 + $0x38] sm:$0xf] %vm895, %v1520
      %1553 = vst.msk [vmem:[%s448 + $0x3c] sm:$0xf] %vm895, %v1521
      %1554 = vst.msk [vmem:[%s448 + $0x40] sm:$0xf] %vm895, %v1522
      %1555 = vst.msk [vmem:[%s448 + $0x44] sm:$0xf] %vm895, %v1523
      %1556 = vst.msk [vmem:[%s448 + $0x48] sm:$0xf] %vm895, %v1524
      %1557 = vst.msk [vmem:[%s448 + $0x4c] sm:$0xf] %vm895, %v1525
      %1558 = vst.msk [vmem:[%s448 + $0x50] sm:$0xf] %vm895, %v1526
      %1559 = vst.msk [vmem:[%s448 + $0x54] sm:$0xf] %vm895, %v1527
      %1560 = vst.msk [vmem:[%s448 + $0x58] sm:$0xf] %vm895, %v1528
      %1561 = vst.msk [vmem:[%s448 + $0x5c] sm:$0xf] %vm895, %v1529
      %1562 = vst.msk [vmem:[%s448 + $0x60] sm:$0xf] %vm895, %v1530
      %1563 = vst.msk [vmem:[%s448 + $0x64] sm:$0xf] %vm895, %v1531
      %1564 = vst.msk [vmem:[%s448 + $0x68] sm:$0xf] %vm895, %v1532
      %1565 = vst.msk [vmem:[%s448 + $0x6c] sm:$0xf] %vm895, %v1533
      %1566 = vst.msk [vmem:[%s448 + $0x70] sm:$0xf] %vm895, %v1534
      %1567 = vst.msk [vmem:[%s448 + $0x74] sm:$0xf] %vm895, %v1535
      %1568 = vst.msk [vmem:[%s448 + $0x78] sm:$0xf] %vm895, %v1536
      %1569 = vst.msk [vmem:[%s448 + $0x7c] sm:$0xf] %vm895, %v1537
      %v1570 = vrot.slane %v705, 4
      %v1571 = vsel %vm1058, %v1570, %v695
      %v1572 = vrot.slane %v695, 4
      %v1573 = vsel %vm1058, %v705, %v1572
      %v1575 = vunpack.c.l.s4 1983009808
      %v1576 = vunpack.c.0.s8 %v1575
      %v1577 = vperm.slane %v1571, %v1576
      %v1579 = vunpack.c.l.s4 1983009808
      %v1580 = vunpack.c.0.s8 %v1579
      %v1581 = vperm.slane %v1573, %v1580
      %v1582 = vrot.slane %v710, 4
      %v1583 = vsel %vm1058, %v1582, %v700
      %v1584 = vrot.slane %v700, 4
      %v1585 = vsel %vm1058, %v710, %v1584
      %v1587 = vunpack.c.l.s4 1983009808
      %v1588 = vunpack.c.0.s8 %v1587
      %v1589 = vperm.slane %v1583, %v1588
      %v1591 = vunpack.c.l.s4 1983009808
      %v1592 = vunpack.c.0.s8 %v1591
      %v1593 = vperm.slane %v1585, %v1592
      %v1594 = vrot.slane %v725, 4
      %v1595 = vsel %vm1058, %v1594, %v715
      %v1596 = vrot.slane %v715, 4
      %v1597 = vsel %vm1058, %v725, %v1596
      %v1599 = vunpack.c.l.s4 1983009808
      %v1600 = vunpack.c.0.s8 %v1599
      %v1601 = vperm.slane %v1595, %v1600
      %v1603 = vunpack.c.l.s4 1983009808
      %v1604 = vunpack.c.0.s8 %v1603
      %v1605 = vperm.slane %v1597, %v1604
      %v1606 = vrot.slane %v730, 4
      %v1607 = vsel %vm1058, %v1606, %v720
      %v1608 = vrot.slane %v720, 4
      %v1609 = vsel %vm1058, %v730, %v1608
      %v1611 = vunpack.c.l.s4 1983009808
      %v1612 = vunpack.c.0.s8 %v1611
      %v1613 = vperm.slane %v1607, %v1612
      %v1615 = vunpack.c.l.s4 1983009808
      %v1616 = vunpack.c.0.s8 %v1615
      %v1617 = vperm.slane %v1609, %v1616
      %v1618 = vrot.slane %v1589, 4
      %v1619 = vsel %vm1058, %v1618, %v1577
      %v1620 = vrot.slane %v1577, 4
      %v1621 = vsel %vm1058, %v1589, %v1620
      %v1623 = vunpack.c.l.s4 1934713408
      %v1624 = vunpack.c.0.s8 %v1623
      %v1625 = vperm.slane %v1619, %v1624
      %v1627 = vunpack.c.l.s4 1934713408
      %v1628 = vunpack.c.0.s8 %v1627
      %v1629 = vperm.slane %v1621, %v1628
      %v1630 = vrot.slane %v1593, 4
      %v1631 = vsel %vm1058, %v1630, %v1581
      %v1632 = vrot.slane %v1581, 4
      %v1633 = vsel %vm1058, %v1593, %v1632
      %v1635 = vunpack.c.l.s4 1934713408
      %v1636 = vunpack.c.0.s8 %v1635
      %v1637 = vperm.slane %v1631, %v1636
      %v1639 = vunpack.c.l.s4 1934713408
      %v1640 = vunpack.c.0.s8 %v1639
      %v1641 = vperm.slane %v1633, %v1640
      %v1642 = vrot.slane %v1613, 4
      %v1643 = vsel %vm1058, %v1642, %v1601
      %v1644 = vrot.slane %v1601, 4
      %v1645 = vsel %vm1058, %v1613, %v1644
      %v1647 = vunpack.c.l.s4 1934713408
      %v1648 = vunpack.c.0.s8 %v1647
      %v1649 = vperm.slane %v1643, %v1648
      %v1651 = vunpack.c.l.s4 1934713408
      %v1652 = vunpack.c.0.s8 %v1651
      %v1653 = vperm.slane %v1645, %v1652
      %v1654 = vrot.slane %v1617, 4
      %v1655 = vsel %vm1058, %v1654, %v1605
      %v1656 = vrot.slane %v1605, 4
      %v1657 = vsel %vm1058, %v1617, %v1656
      %v1659 = vunpack.c.l.s4 1934713408
      %v1660 = vunpack.c.0.s8 %v1659
      %v1661 = vperm.slane %v1655, %v1660
      %v1663 = vunpack.c.l.s4 1934713408
      %v1664 = vunpack.c.0.s8 %v1663
      %v1665 = vperm.slane %v1657, %v1664
      %v1666 = vrot.slane %v1649, 4
      %v1667 = vsel %vm1058, %v1666, %v1625
      %v1668 = vrot.slane %v1625, 4
      %v1669 = vsel %vm1058, %v1649, %v1668
      %v1670 = vrot.slane %v1653, 4
      %v1671 = vsel %vm1058, %v1670, %v1629
      %v1672 = vrot.slane %v1629, 4
      %v1673 = vsel %vm1058, %v1653, %v1672
      %v1674 = vrot.slane %v1661, 4
      %v1675 = vsel %vm1058, %v1674, %v1637
      %v1676 = vrot.slane %v1637, 4
      %v1677 = vsel %vm1058, %v1661, %v1676
      %v1678 = vrot.slane %v1665, 4
      %v1679 = vsel %vm1058, %v1678, %v1641
      %v1680 = vrot.slane %v1641, 4
      %v1681 = vsel %vm1058, %v1665, %v1680
      %v1682 = vrot.slane %v745, 4
      %v1683 = vsel %vm1058, %v1682, %v735
      %v1684 = vrot.slane %v735, 4
      %v1685 = vsel %vm1058, %v745, %v1684
      %v1687 = vunpack.c.l.s4 1983009808
      %v1688 = vunpack.c.0.s8 %v1687
      %v1689 = vperm.slane %v1683, %v1688
      %v1691 = vunpack.c.l.s4 1983009808
      %v1692 = vunpack.c.0.s8 %v1691
      %v1693 = vperm.slane %v1685, %v1692
      %v1694 = vrot.slane %v750, 4
      %v1695 = vsel %vm1058, %v1694, %v740
      %v1696 = vrot.slane %v740, 4
      %v1697 = vsel %vm1058, %v750, %v1696
      %v1699 = vunpack.c.l.s4 1983009808
      %v1700 = vunpack.c.0.s8 %v1699
      %v1701 = vperm.slane %v1695, %v1700
      %v1703 = vunpack.c.l.s4 1983009808
      %v1704 = vunpack.c.0.s8 %v1703
      %v1705 = vperm.slane %v1697, %v1704
      %v1706 = vrot.slane %v765, 4
      %v1707 = vsel %vm1058, %v1706, %v755
      %v1708 = vrot.slane %v755, 4
      %v1709 = vsel %vm1058, %v765, %v1708
      %v1711 = vunpack.c.l.s4 1983009808
      %v1712 = vunpack.c.0.s8 %v1711
      %v1713 = vperm.slane %v1707, %v1712
      %v1715 = vunpack.c.l.s4 1983009808
      %v1716 = vunpack.c.0.s8 %v1715
      %v1717 = vperm.slane %v1709, %v1716
      %v1718 = vrot.slane %v770, 4
      %v1719 = vsel %vm1058, %v1718, %v760
      %v1720 = vrot.slane %v760, 4
      %v1721 = vsel %vm1058, %v770, %v1720
      %v1723 = vunpack.c.l.s4 1983009808
      %v1724 = vunpack.c.0.s8 %v1723
      %v1725 = vperm.slane %v1719, %v1724
      %v1727 = vunpack.c.l.s4 1983009808
      %v1728 = vunpack.c.0.s8 %v1727
      %v1729 = vperm.slane %v1721, %v1728
      %v1730 = vrot.slane %v1701, 4
      %v1731 = vsel %vm1058, %v1730, %v1689
      %v1732 = vrot.slane %v1689, 4
      %v1733 = vsel %vm1058, %v1701, %v1732
      %v1735 = vunpack.c.l.s4 1934713408
      %v1736 = vunpack.c.0.s8 %v1735
      %v1737 = vperm.slane %v1731, %v1736
      %v1739 = vunpack.c.l.s4 1934713408
      %v1740 = vunpack.c.0.s8 %v1739
      %v1741 = vperm.slane %v1733, %v1740
      %v1742 = vrot.slane %v1705, 4
      %v1743 = vsel %vm1058, %v1742, %v1693
      %v1744 = vrot.slane %v1693, 4
      %v1745 = vsel %vm1058, %v1705, %v1744
      %v1747 = vunpack.c.l.s4 1934713408
      %v1748 = vunpack.c.0.s8 %v1747
      %v1749 = vperm.slane %v1743, %v1748
      %v1751 = vunpack.c.l.s4 1934713408
      %v1752 = vunpack.c.0.s8 %v1751
      %v1753 = vperm.slane %v1745, %v1752
      %v1754 = vrot.slane %v1725, 4
      %v1755 = vsel %vm1058, %v1754, %v1713
      %v1756 = vrot.slane %v1713, 4
      %v1757 = vsel %vm1058, %v1725, %v1756
      %v1759 = vunpack.c.l.s4 1934713408
      %v1760 = vunpack.c.0.s8 %v1759
      %v1761 = vperm.slane %v1755, %v1760
      %v1763 = vunpack.c.l.s4 1934713408
      %v1764 = vunpack.c.0.s8 %v1763
      %v1765 = vperm.slane %v1757, %v1764
      %v1766 = vrot.slane %v1729, 4
      %v1767 = vsel %vm1058, %v1766, %v1717
      %v1768 = vrot.slane %v1717, 4
      %v1769 = vsel %vm1058, %v1729, %v1768
      %v1771 = vunpack.c.l.s4 1934713408
      %v1772 = vunpack.c.0.s8 %v1771
      %v1773 = vperm.slane %v1767, %v1772
      %v1775 = vunpack.c.l.s4 1934713408
      %v1776 = vunpack.c.0.s8 %v1775
      %v1777 = vperm.slane %v1769, %v1776
      %v1778 = vrot.slane %v1761, 4
      %v1779 = vsel %vm1058, %v1778, %v1737
      %v1780 = vrot.slane %v1737, 4
      %v1781 = vsel %vm1058, %v1761, %v1780
      %v1782 = vrot.slane %v1765, 4
      %v1783 = vsel %vm1058, %v1782, %v1741
      %v1784 = vrot.slane %v1741, 4
      %v1785 = vsel %vm1058, %v1765, %v1784
      %v1786 = vrot.slane %v1773, 4
      %v1787 = vsel %vm1058, %v1786, %v1749
      %v1788 = vrot.slane %v1749, 4
      %v1789 = vsel %vm1058, %v1773, %v1788
      %v1790 = vrot.slane %v1777, 4
      %v1791 = vsel %vm1058, %v1790, %v1753
      %v1792 = vrot.slane %v1753, 4
      %v1793 = vsel %vm1058, %v1777, %v1792
      %v1794 = vrot.slane %v707, 4
      %v1795 = vsel %vm1058, %v1794, %v697
      %v1796 = vrot.slane %v697, 4
      %v1797 = vsel %vm1058, %v707, %v1796
      %v1799 = vunpack.c.l.s4 1983009808
      %v1800 = vunpack.c.0.s8 %v1799
      %v1801 = vperm.slane %v1795, %v1800
      %v1803 = vunpack.c.l.s4 1983009808
      %v1804 = vunpack.c.0.s8 %v1803
      %v1805 = vperm.slane %v1797, %v1804
      %v1806 = vrot.slane %v712, 4
      %v1807 = vsel %vm1058, %v1806, %v702
      %v1808 = vrot.slane %v702, 4
      %v1809 = vsel %vm1058, %v712, %v1808
      %v1811 = vunpack.c.l.s4 1983009808
      %v1812 = vunpack.c.0.s8 %v1811
      %v1813 = vperm.slane %v1807, %v1812
      %v1815 = vunpack.c.l.s4 1983009808
      %v1816 = vunpack.c.0.s8 %v1815
      %v1817 = vperm.slane %v1809, %v1816
      %v1818 = vrot.slane %v727, 4
      %v1819 = vsel %vm1058, %v1818, %v717
      %v1820 = vrot.slane %v717, 4
      %v1821 = vsel %vm1058, %v727, %v1820
      %v1823 = vunpack.c.l.s4 1983009808
      %v1824 = vunpack.c.0.s8 %v1823
      %v1825 = vperm.slane %v1819, %v1824
      %v1827 = vunpack.c.l.s4 1983009808
      %v1828 = vunpack.c.0.s8 %v1827
      %v1829 = vperm.slane %v1821, %v1828
      %v1830 = vrot.slane %v732, 4
      %v1831 = vsel %vm1058, %v1830, %v722
      %v1832 = vrot.slane %v722, 4
      %v1833 = vsel %vm1058, %v732, %v1832
      %v1835 = vunpack.c.l.s4 1983009808
      %v1836 = vunpack.c.0.s8 %v1835
      %v1837 = vperm.slane %v1831, %v1836
      %v1839 = vunpack.c.l.s4 1983009808
      %v1840 = vunpack.c.0.s8 %v1839
      %v1841 = vperm.slane %v1833, %v1840
      %v1842 = vrot.slane %v1813, 4
      %v1843 = vsel %vm1058, %v1842, %v1801
      %v1844 = vrot.slane %v1801, 4
      %v1845 = vsel %vm1058, %v1813, %v1844
      %v1847 = vunpack.c.l.s4 1934713408
      %v1848 = vunpack.c.0.s8 %v1847
      %v1849 = vperm.slane %v1843, %v1848
      %v1851 = vunpack.c.l.s4 1934713408
      %v1852 = vunpack.c.0.s8 %v1851
      %v1853 = vperm.slane %v1845, %v1852
      %v1854 = vrot.slane %v1817, 4
      %v1855 = vsel %vm1058, %v1854, %v1805
      %v1856 = vrot.slane %v1805, 4
      %v1857 = vsel %vm1058, %v1817, %v1856
      %v1859 = vunpack.c.l.s4 1934713408
      %v1860 = vunpack.c.0.s8 %v1859
      %v1861 = vperm.slane %v1855, %v1860
      %v1863 = vunpack.c.l.s4 1934713408
      %v1864 = vunpack.c.0.s8 %v1863
      %v1865 = vperm.slane %v1857, %v1864
      %v1866 = vrot.slane %v1837, 4
      %v1867 = vsel %vm1058, %v1866, %v1825
      %v1868 = vrot.slane %v1825, 4
      %v1869 = vsel %vm1058, %v1837, %v1868
      %v1871 = vunpack.c.l.s4 1934713408
      %v1872 = vunpack.c.0.s8 %v1871
      %v1873 = vperm.slane %v1867, %v1872
      %v1875 = vunpack.c.l.s4 1934713408
      %v1876 = vunpack.c.0.s8 %v1875
      %v1877 = vperm.slane %v1869, %v1876
      %v1878 = vrot.slane %v1841, 4
      %v1879 = vsel %vm1058, %v1878, %v1829
      %v1880 = vrot.slane %v1829, 4
      %v1881 = vsel %vm1058, %v1841, %v1880
      %v1883 = vunpack.c.l.s4 1934713408
      %v1884 = vunpack.c.0.s8 %v1883
      %v1885 = vperm.slane %v1879, %v1884
      %v1887 = vunpack.c.l.s4 1934713408
      %v1888 = vunpack.c.0.s8 %v1887
      %v1889 = vperm.slane %v1881, %v1888
      %v1890 = vrot.slane %v1873, 4
      %v1891 = vsel %vm1058, %v1890, %v1849
      %v1892 = vrot.slane %v1849, 4
      %v1893 = vsel %vm1058, %v1873, %v1892
      %v1894 = vrot.slane %v1877, 4
      %v1895 = vsel %vm1058, %v1894, %v1853
      %v1896 = vrot.slane %v1853, 4
      %v1897 = vsel %vm1058, %v1877, %v1896
      %v1898 = vrot.slane %v1885, 4
      %v1899 = vsel %vm1058, %v1898, %v1861
      %v1900 = vrot.slane %v1861, 4
      %v1901 = vsel %vm1058, %v1885, %v1900
      %v1902 = vrot.slane %v1889, 4
      %v1903 = vsel %vm1058, %v1902, %v1865
      %v1904 = vrot.slane %v1865, 4
      %v1905 = vsel %vm1058, %v1889, %v1904
      %v1906 = vrot.slane %v747, 4
      %v1907 = vsel %vm1058, %v1906, %v737
      %v1908 = vrot.slane %v737, 4
      %v1909 = vsel %vm1058, %v747, %v1908
      %v1911 = vunpack.c.l.s4 1983009808
      %v1912 = vunpack.c.0.s8 %v1911
      %v1913 = vperm.slane %v1907, %v1912
      %v1915 = vunpack.c.l.s4 1983009808
      %v1916 = vunpack.c.0.s8 %v1915
      %v1917 = vperm.slane %v1909, %v1916
      %v1918 = vrot.slane %v752, 4
      %v1919 = vsel %vm1058, %v1918, %v742
      %v1920 = vrot.slane %v742, 4
      %v1921 = vsel %vm1058, %v752, %v1920
      %v1923 = vunpack.c.l.s4 1983009808
      %v1924 = vunpack.c.0.s8 %v1923
      %v1925 = vperm.slane %v1919, %v1924
      %v1927 = vunpack.c.l.s4 1983009808
      %v1928 = vunpack.c.0.s8 %v1927
      %v1929 = vperm.slane %v1921, %v1928
      %v1930 = vrot.slane %v767, 4
      %v1931 = vsel %vm1058, %v1930, %v757
      %v1932 = vrot.slane %v757, 4
      %v1933 = vsel %vm1058, %v767, %v1932
      %v1935 = vunpack.c.l.s4 1983009808
      %v1936 = vunpack.c.0.s8 %v1935
      %v1937 = vperm.slane %v1931, %v1936
      %v1939 = vunpack.c.l.s4 1983009808
      %v1940 = vunpack.c.0.s8 %v1939
      %v1941 = vperm.slane %v1933, %v1940
      %v1942 = vrot.slane %v772, 4
      %v1943 = vsel %vm1058, %v1942, %v762
      %v1944 = vrot.slane %v762, 4
      %v1945 = vsel %vm1058, %v772, %v1944
      %v1947 = vunpack.c.l.s4 1983009808
      %v1948 = vunpack.c.0.s8 %v1947
      %v1949 = vperm.slane %v1943, %v1948
      %v1951 = vunpack.c.l.s4 1983009808
      %v1952 = vunpack.c.0.s8 %v1951
      %v1953 = vperm.slane %v1945, %v1952
      %v1954 = vrot.slane %v1925, 4
      %v1955 = vsel %vm1058, %v1954, %v1913
      %v1956 = vrot.slane %v1913, 4
      %v1957 = vsel %vm1058, %v1925, %v1956
      %v1959 = vunpack.c.l.s4 1934713408
      %v1960 = vunpack.c.0.s8 %v1959
      %v1961 = vperm.slane %v1955, %v1960
      %v1963 = vunpack.c.l.s4 1934713408
      %v1964 = vunpack.c.0.s8 %v1963
      %v1965 = vperm.slane %v1957, %v1964
      %v1966 = vrot.slane %v1929, 4
      %v1967 = vsel %vm1058, %v1966, %v1917
      %v1968 = vrot.slane %v1917, 4
      %v1969 = vsel %vm1058, %v1929, %v1968
      %v1971 = vunpack.c.l.s4 1934713408
      %v1972 = vunpack.c.0.s8 %v1971
      %v1973 = vperm.slane %v1967, %v1972
      %v1975 = vunpack.c.l.s4 1934713408
      %v1976 = vunpack.c.0.s8 %v1975
      %v1977 = vperm.slane %v1969, %v1976
      %v1978 = vrot.slane %v1949, 4
      %v1979 = vsel %vm1058, %v1978, %v1937
      %v1980 = vrot.slane %v1937, 4
      %v1981 = vsel %vm1058, %v1949, %v1980
      %v1983 = vunpack.c.l.s4 1934713408
      %v1984 = vunpack.c.0.s8 %v1983
      %v1985 = vperm.slane %v1979, %v1984
      %v1987 = vunpack.c.l.s4 1934713408
      %v1988 = vunpack.c.0.s8 %v1987
      %v1989 = vperm.slane %v1981, %v1988
      %v1990 = vrot.slane %v1953, 4
      %v1991 = vsel %vm1058, %v1990, %v1941
      %v1992 = vrot.slane %v1941, 4
      %v1993 = vsel %vm1058, %v1953, %v1992
      %v1995 = vunpack.c.l.s4 1934713408
      %v1996 = vunpack.c.0.s8 %v1995
      %v1997 = vperm.slane %v1991, %v1996
      %v1999 = vunpack.c.l.s4 1934713408
      %v2000 = vunpack.c.0.s8 %v1999
      %v2001 = vperm.slane %v1993, %v2000
      %v2002 = vrot.slane %v1985, 4
      %v2003 = vsel %vm1058, %v2002, %v1961
      %v2004 = vrot.slane %v1961, 4
      %v2005 = vsel %vm1058, %v1985, %v2004
      %v2006 = vrot.slane %v1989, 4
      %v2007 = vsel %vm1058, %v2006, %v1965
      %v2008 = vrot.slane %v1965, 4
      %v2009 = vsel %vm1058, %v1989, %v2008
      %v2010 = vrot.slane %v1997, 4
      %v2011 = vsel %vm1058, %v2010, %v1973
      %v2012 = vrot.slane %v1973, 4
      %v2013 = vsel %vm1058, %v1997, %v2012
      %v2014 = vrot.slane %v2001, 4
      %v2015 = vsel %vm1058, %v2014, %v1977
      %v2016 = vrot.slane %v1977, 4
      %v2017 = vsel %vm1058, %v2001, %v2016
      %v2018 = vpack.c.bf16 %v1667, %v1667
      %v2019 = vpack.c.bf16 %v1779, %v1779
      %v2020 = vpack.c.bf16 %v1669, %v1669
      %v2021 = vpack.c.bf16 %v1781, %v1781
      %v2022 = vpack.c.bf16 %v1671, %v1671
      %v2023 = vpack.c.bf16 %v1783, %v1783
      %v2024 = vpack.c.bf16 %v1673, %v1673
      %v2025 = vpack.c.bf16 %v1785, %v1785
      %v2026 = vpack.c.bf16 %v1675, %v1675
      %v2027 = vpack.c.bf16 %v1787, %v1787
      %v2028 = vpack.c.bf16 %v1677, %v1677
      %v2029 = vpack.c.bf16 %v1789, %v1789
      %v2030 = vpack.c.bf16 %v1679, %v1679
      %v2031 = vpack.c.bf16 %v1791, %v1791
      %v2032 = vpack.c.bf16 %v1681, %v1681
      %v2033 = vpack.c.bf16 %v1793, %v1793
      %v2034 = vpack.c.bf16 %v1891, %v1891
      %v2035 = vpack.c.bf16 %v2003, %v2003
      %v2036 = vpack.c.bf16 %v1893, %v1893
      %v2037 = vpack.c.bf16 %v2005, %v2005
      %v2038 = vpack.c.bf16 %v1895, %v1895
      %v2039 = vpack.c.bf16 %v2007, %v2007
      %v2040 = vpack.c.bf16 %v1897, %v1897
      %v2041 = vpack.c.bf16 %v2009, %v2009
      %v2042 = vpack.c.bf16 %v1899, %v1899
      %v2043 = vpack.c.bf16 %v2011, %v2011
      %v2044 = vpack.c.bf16 %v1901, %v1901
      %v2045 = vpack.c.bf16 %v2013, %v2013
      %v2046 = vpack.c.bf16 %v1903, %v1903
      %v2047 = vpack.c.bf16 %v2015, %v2015
      %v2048 = vpack.c.bf16 %v1905, %v1905
      %v2049 = vpack.c.bf16 %v2017, %v2017
      %2050 = vst.msk [vmem:[%s458] sm:$0xf] %vm895, %v2018
      %2051 = vst.msk [vmem:[%s458 + $0x4] sm:$0xf] %vm895, %v2019
      %2052 = vst.msk [vmem:[%s458 + $0x8] sm:$0xf] %vm895, %v2020
      %2053 = vst.msk [vmem:[%s458 + $0xc] sm:$0xf] %vm895, %v2021
      %2054 = vst.msk [vmem:[%s458 + $0x10] sm:$0xf] %vm895, %v2022
      %2055 = vst.msk [vmem:[%s458 + $0x14] sm:$0xf] %vm895, %v2023
      %2056 = vst.msk [vmem:[%s458 + $0x18] sm:$0xf] %vm895, %v2024
      %2057 = vst.msk [vmem:[%s458 + $0x1c] sm:$0xf] %vm895, %v2025
      %2058 = vst.msk [vmem:[%s458 + $0x20] sm:$0xf] %vm895, %v2026
      %2059 = vst.msk [vmem:[%s458 + $0x24] sm:$0xf] %vm895, %v2027
      %2060 = vst.msk [vmem:[%s458 + $0x28] sm:$0xf] %vm895, %v2028
      %2061 = vst.msk [vmem:[%s458 + $0x2c] sm:$0xf] %vm895, %v2029
      %2062 = vst.msk [vmem:[%s458 + $0x30] sm:$0xf] %vm895, %v2030
      %2063 = vst.msk [vmem:[%s458 + $0x34] sm:$0xf] %vm895, %v2031
      %2064 = vst.msk [vmem:[%s458 + $0x38] sm:$0xf] %vm895, %v2032
      %2065 = vst.msk [vmem:[%s458 + $0x3c] sm:$0xf] %vm895, %v2033
      %2066 = vst.msk [vmem:[%s458 + $0x40] sm:$0xf] %vm895, %v2034
      %2067 = vst.msk [vmem:[%s458 + $0x44] sm:$0xf] %vm895, %v2035
      %2068 = vst.msk [vmem:[%s458 + $0x48] sm:$0xf] %vm895, %v2036
      %2069 = vst.msk [vmem:[%s458 + $0x4c] sm:$0xf] %vm895, %v2037
      %2070 = vst.msk [vmem:[%s458 + $0x50] sm:$0xf] %vm895, %v2038
      %2071 = vst.msk [vmem:[%s458 + $0x54] sm:$0xf] %vm895, %v2039
      %2072 = vst.msk [vmem:[%s458 + $0x58] sm:$0xf] %vm895, %v2040
      %2073 = vst.msk [vmem:[%s458 + $0x5c] sm:$0xf] %vm895, %v2041
      %2074 = vst.msk [vmem:[%s458 + $0x60] sm:$0xf] %vm895, %v2042
      %2075 = vst.msk [vmem:[%s458 + $0x64] sm:$0xf] %vm895, %v2043
      %2076 = vst.msk [vmem:[%s458 + $0x68] sm:$0xf] %vm895, %v2044
      %2077 = vst.msk [vmem:[%s458 + $0x6c] sm:$0xf] %vm895, %v2045
      %2078 = vst.msk [vmem:[%s458 + $0x70] sm:$0xf] %vm895, %v2046
      %2079 = vst.msk [vmem:[%s458 + $0x74] sm:$0xf] %vm895, %v2047
      %2080 = vst.msk [vmem:[%s458 + $0x78] sm:$0xf] %vm895, %v2048
      %2081 = vst.msk [vmem:[%s458 + $0x7c] sm:$0xf] %vm895, %v2049
      %v2082 = vrot.slane %v794, 4
      %v2083 = vsel %vm1058, %v2082, %v784
      %v2084 = vrot.slane %v784, 4
      %v2085 = vsel %vm1058, %v794, %v2084
      %v2087 = vunpack.c.l.s4 1983009808
      %v2088 = vunpack.c.0.s8 %v2087
      %v2089 = vperm.slane %v2083, %v2088
      %v2091 = vunpack.c.l.s4 1983009808
      %v2092 = vunpack.c.0.s8 %v2091
      %v2093 = vperm.slane %v2085, %v2092
      %v2094 = vrot.slane %v799, 4
      %v2095 = vsel %vm1058, %v2094, %v789
      %v2096 = vrot.slane %v789, 4
      %v2097 = vsel %vm1058, %v799, %v2096
      %v2099 = vunpack.c.l.s4 1983009808
      %v2100 = vunpack.c.0.s8 %v2099
      %v2101 = vperm.slane %v2095, %v2100
      %v2103 = vunpack.c.l.s4 1983009808
      %v2104 = vunpack.c.0.s8 %v2103
      %v2105 = vperm.slane %v2097, %v2104
      %v2106 = vrot.slane %v814, 4
      %v2107 = vsel %vm1058, %v2106, %v804
      %v2108 = vrot.slane %v804, 4
      %v2109 = vsel %vm1058, %v814, %v2108
      %v2111 = vunpack.c.l.s4 1983009808
      %v2112 = vunpack.c.0.s8 %v2111
      %v2113 = vperm.slane %v2107, %v2112
      %v2115 = vunpack.c.l.s4 1983009808
      %v2116 = vunpack.c.0.s8 %v2115
      %v2117 = vperm.slane %v2109, %v2116
      %v2118 = vrot.slane %v819, 4
      %v2119 = vsel %vm1058, %v2118, %v809
      %v2120 = vrot.slane %v809, 4
      %v2121 = vsel %vm1058, %v819, %v2120
      %v2123 = vunpack.c.l.s4 1983009808
      %v2124 = vunpack.c.0.s8 %v2123
      %v2125 = vperm.slane %v2119, %v2124
      %v2127 = vunpack.c.l.s4 1983009808
      %v2128 = vunpack.c.0.s8 %v2127
      %v2129 = vperm.slane %v2121, %v2128
      %v2130 = vrot.slane %v2101, 4
      %v2131 = vsel %vm1058, %v2130, %v2089
      %v2132 = vrot.slane %v2089, 4
      %v2133 = vsel %vm1058, %v2101, %v2132
      %v2135 = vunpack.c.l.s4 1934713408
      %v2136 = vunpack.c.0.s8 %v2135
      %v2137 = vperm.slane %v2131, %v2136
      %v2139 = vunpack.c.l.s4 1934713408
      %v2140 = vunpack.c.0.s8 %v2139
      %v2141 = vperm.slane %v2133, %v2140
      %v2142 = vrot.slane %v2105, 4
      %v2143 = vsel %vm1058, %v2142, %v2093
      %v2144 = vrot.slane %v2093, 4
      %v2145 = vsel %vm1058, %v2105, %v2144
      %v2147 = vunpack.c.l.s4 1934713408
      %v2148 = vunpack.c.0.s8 %v2147
      %v2149 = vperm.slane %v2143, %v2148
      %v2151 = vunpack.c.l.s4 1934713408
      %v2152 = vunpack.c.0.s8 %v2151
      %v2153 = vperm.slane %v2145, %v2152
      %v2154 = vrot.slane %v2125, 4
      %v2155 = vsel %vm1058, %v2154, %v2113
      %v2156 = vrot.slane %v2113, 4
      %v2157 = vsel %vm1058, %v2125, %v2156
      %v2159 = vunpack.c.l.s4 1934713408
      %v2160 = vunpack.c.0.s8 %v2159
      %v2161 = vperm.slane %v2155, %v2160
      %v2163 = vunpack.c.l.s4 1934713408
      %v2164 = vunpack.c.0.s8 %v2163
      %v2165 = vperm.slane %v2157, %v2164
      %v2166 = vrot.slane %v2129, 4
      %v2167 = vsel %vm1058, %v2166, %v2117
      %v2168 = vrot.slane %v2117, 4
      %v2169 = vsel %vm1058, %v2129, %v2168
      %v2171 = vunpack.c.l.s4 1934713408
      %v2172 = vunpack.c.0.s8 %v2171
      %v2173 = vperm.slane %v2167, %v2172
      %v2175 = vunpack.c.l.s4 1934713408
      %v2176 = vunpack.c.0.s8 %v2175
      %v2177 = vperm.slane %v2169, %v2176
      %v2178 = vrot.slane %v2161, 4
      %v2179 = vsel %vm1058, %v2178, %v2137
      %v2180 = vrot.slane %v2137, 4
      %v2181 = vsel %vm1058, %v2161, %v2180
      %v2182 = vrot.slane %v2165, 4
      %v2183 = vsel %vm1058, %v2182, %v2141
      %v2184 = vrot.slane %v2141, 4
      %v2185 = vsel %vm1058, %v2165, %v2184
      %v2186 = vrot.slane %v2173, 4
      %v2187 = vsel %vm1058, %v2186, %v2149
      %v2188 = vrot.slane %v2149, 4
      %v2189 = vsel %vm1058, %v2173, %v2188
      %v2190 = vrot.slane %v2177, 4
      %v2191 = vsel %vm1058, %v2190, %v2153
      %v2192 = vrot.slane %v2153, 4
      %v2193 = vsel %vm1058, %v2177, %v2192
      %v2194 = vrot.slane %v834, 4
      %v2195 = vsel %vm1058, %v2194, %v824
      %v2196 = vrot.slane %v824, 4
      %v2197 = vsel %vm1058, %v834, %v2196
      %v2199 = vunpack.c.l.s4 1983009808
      %v2200 = vunpack.c.0.s8 %v2199
      %v2201 = vperm.slane %v2195, %v2200
      %v2203 = vunpack.c.l.s4 1983009808
      %v2204 = vunpack.c.0.s8 %v2203
      %v2205 = vperm.slane %v2197, %v2204
      %v2206 = vrot.slane %v839, 4
      %v2207 = vsel %vm1058, %v2206, %v829
      %v2208 = vrot.slane %v829, 4
      %v2209 = vsel %vm1058, %v839, %v2208
      %v2211 = vunpack.c.l.s4 1983009808
      %v2212 = vunpack.c.0.s8 %v2211
      %v2213 = vperm.slane %v2207, %v2212
      %v2215 = vunpack.c.l.s4 1983009808
      %v2216 = vunpack.c.0.s8 %v2215
      %v2217 = vperm.slane %v2209, %v2216
      %v2218 = vrot.slane %v854, 4
      %v2219 = vsel %vm1058, %v2218, %v844
      %v2220 = vrot.slane %v844, 4
      %v2221 = vsel %vm1058, %v854, %v2220
      %v2223 = vunpack.c.l.s4 1983009808
      %v2224 = vunpack.c.0.s8 %v2223
      %v2225 = vperm.slane %v2219, %v2224
      %v2227 = vunpack.c.l.s4 1983009808
      %v2228 = vunpack.c.0.s8 %v2227
      %v2229 = vperm.slane %v2221, %v2228
      %v2230 = vrot.slane %v859, 4
      %v2231 = vsel %vm1058, %v2230, %v849
      %v2232 = vrot.slane %v849, 4
      %v2233 = vsel %vm1058, %v859, %v2232
      %v2235 = vunpack.c.l.s4 1983009808
      %v2236 = vunpack.c.0.s8 %v2235
      %v2237 = vperm.slane %v2231, %v2236
      %v2239 = vunpack.c.l.s4 1983009808
      %v2240 = vunpack.c.0.s8 %v2239
      %v2241 = vperm.slane %v2233, %v2240
      %v2242 = vrot.slane %v2213, 4
      %v2243 = vsel %vm1058, %v2242, %v2201
      %v2244 = vrot.slane %v2201, 4
      %v2245 = vsel %vm1058, %v2213, %v2244
      %v2247 = vunpack.c.l.s4 1934713408
      %v2248 = vunpack.c.0.s8 %v2247
      %v2249 = vperm.slane %v2243, %v2248
      %v2251 = vunpack.c.l.s4 1934713408
      %v2252 = vunpack.c.0.s8 %v2251
      %v2253 = vperm.slane %v2245, %v2252
      %v2254 = vrot.slane %v2217, 4
      %v2255 = vsel %vm1058, %v2254, %v2205
      %v2256 = vrot.slane %v2205, 4
      %v2257 = vsel %vm1058, %v2217, %v2256
      %v2259 = vunpack.c.l.s4 1934713408
      %v2260 = vunpack.c.0.s8 %v2259
      %v2261 = vperm.slane %v2255, %v2260
      %v2263 = vunpack.c.l.s4 1934713408
      %v2264 = vunpack.c.0.s8 %v2263
      %v2265 = vperm.slane %v2257, %v2264
      %v2266 = vrot.slane %v2237, 4
      %v2267 = vsel %vm1058, %v2266, %v2225
      %v2268 = vrot.slane %v2225, 4
      %v2269 = vsel %vm1058, %v2237, %v2268
      %v2271 = vunpack.c.l.s4 1934713408
      %v2272 = vunpack.c.0.s8 %v2271
      %v2273 = vperm.slane %v2267, %v2272
      %v2275 = vunpack.c.l.s4 1934713408
      %v2276 = vunpack.c.0.s8 %v2275
      %v2277 = vperm.slane %v2269, %v2276
      %v2278 = vrot.slane %v2241, 4
      %v2279 = vsel %vm1058, %v2278, %v2229
      %v2280 = vrot.slane %v2229, 4
      %v2281 = vsel %vm1058, %v2241, %v2280
      %v2283 = vunpack.c.l.s4 1934713408
      %v2284 = vunpack.c.0.s8 %v2283
      %v2285 = vperm.slane %v2279, %v2284
      %v2287 = vunpack.c.l.s4 1934713408
      %v2288 = vunpack.c.0.s8 %v2287
      %v2289 = vperm.slane %v2281, %v2288
      %v2290 = vrot.slane %v2273, 4
      %v2291 = vsel %vm1058, %v2290, %v2249
      %v2292 = vrot.slane %v2249, 4
      %v2293 = vsel %vm1058, %v2273, %v2292
      %v2294 = vrot.slane %v2277, 4
      %v2295 = vsel %vm1058, %v2294, %v2253
      %v2296 = vrot.slane %v2253, 4
      %v2297 = vsel %vm1058, %v2277, %v2296
      %v2298 = vrot.slane %v2285, 4
      %v2299 = vsel %vm1058, %v2298, %v2261
      %v2300 = vrot.slane %v2261, 4
      %v2301 = vsel %vm1058, %v2285, %v2300
      %v2302 = vrot.slane %v2289, 4
      %v2303 = vsel %vm1058, %v2302, %v2265
      %v2304 = vrot.slane %v2265, 4
      %v2305 = vsel %vm1058, %v2289, %v2304
      %v2306 = vrot.slane %v796, 4
      %v2307 = vsel %vm1058, %v2306, %v786
      %v2308 = vrot.slane %v786, 4
      %v2309 = vsel %vm1058, %v796, %v2308
      %v2311 = vunpack.c.l.s4 1983009808
      %v2312 = vunpack.c.0.s8 %v2311
      %v2313 = vperm.slane %v2307, %v2312
      %v2315 = vunpack.c.l.s4 1983009808
      %v2316 = vunpack.c.0.s8 %v2315
      %v2317 = vperm.slane %v2309, %v2316
      %v2318 = vrot.slane %v801, 4
      %v2319 = vsel %vm1058, %v2318, %v791
      %v2320 = vrot.slane %v791, 4
      %v2321 = vsel %vm1058, %v801, %v2320
      %v2323 = vunpack.c.l.s4 1983009808
      %v2324 = vunpack.c.0.s8 %v2323
      %v2325 = vperm.slane %v2319, %v2324
      %v2327 = vunpack.c.l.s4 1983009808
      %v2328 = vunpack.c.0.s8 %v2327
      %v2329 = vperm.slane %v2321, %v2328
      %v2330 = vrot.slane %v816, 4
      %v2331 = vsel %vm1058, %v2330, %v806
      %v2332 = vrot.slane %v806, 4
      %v2333 = vsel %vm1058, %v816, %v2332
      %v2335 = vunpack.c.l.s4 1983009808
      %v2336 = vunpack.c.0.s8 %v2335
      %v2337 = vperm.slane %v2331, %v2336
      %v2339 = vunpack.c.l.s4 1983009808
      %v2340 = vunpack.c.0.s8 %v2339
      %v2341 = vperm.slane %v2333, %v2340
      %v2342 = vrot.slane %v821, 4
      %v2343 = vsel %vm1058, %v2342, %v811
      %v2344 = vrot.slane %v811, 4
      %v2345 = vsel %vm1058, %v821, %v2344
      %v2347 = vunpack.c.l.s4 1983009808
      %v2348 = vunpack.c.0.s8 %v2347
      %v2349 = vperm.slane %v2343, %v2348
      %v2351 = vunpack.c.l.s4 1983009808
      %v2352 = vunpack.c.0.s8 %v2351
      %v2353 = vperm.slane %v2345, %v2352
      %v2354 = vrot.slane %v2325, 4
      %v2355 = vsel %vm1058, %v2354, %v2313
      %v2356 = vrot.slane %v2313, 4
      %v2357 = vsel %vm1058, %v2325, %v2356
      %v2359 = vunpack.c.l.s4 1934713408
      %v2360 = vunpack.c.0.s8 %v2359
      %v2361 = vperm.slane %v2355, %v2360
      %v2363 = vunpack.c.l.s4 1934713408
      %v2364 = vunpack.c.0.s8 %v2363
      %v2365 = vperm.slane %v2357, %v2364
      %v2366 = vrot.slane %v2329, 4
      %v2367 = vsel %vm1058, %v2366, %v2317
      %v2368 = vrot.slane %v2317, 4
      %v2369 = vsel %vm1058, %v2329, %v2368
      %v2371 = vunpack.c.l.s4 1934713408
      %v2372 = vunpack.c.0.s8 %v2371
      %v2373 = vperm.slane %v2367, %v2372
      %v2375 = vunpack.c.l.s4 1934713408
      %v2376 = vunpack.c.0.s8 %v2375
      %v2377 = vperm.slane %v2369, %v2376
      %v2378 = vrot.slane %v2349, 4
      %v2379 = vsel %vm1058, %v2378, %v2337
      %v2380 = vrot.slane %v2337, 4
      %v2381 = vsel %vm1058, %v2349, %v2380
      %v2383 = vunpack.c.l.s4 1934713408
      %v2384 = vunpack.c.0.s8 %v2383
      %v2385 = vperm.slane %v2379, %v2384
      %v2387 = vunpack.c.l.s4 1934713408
      %v2388 = vunpack.c.0.s8 %v2387
      %v2389 = vperm.slane %v2381, %v2388
      %v2390 = vrot.slane %v2353, 4
      %v2391 = vsel %vm1058, %v2390, %v2341
      %v2392 = vrot.slane %v2341, 4
      %v2393 = vsel %vm1058, %v2353, %v2392
      %v2395 = vunpack.c.l.s4 1934713408
      %v2396 = vunpack.c.0.s8 %v2395
      %v2397 = vperm.slane %v2391, %v2396
      %v2399 = vunpack.c.l.s4 1934713408
      %v2400 = vunpack.c.0.s8 %v2399
      %v2401 = vperm.slane %v2393, %v2400
      %v2402 = vrot.slane %v2385, 4
      %v2403 = vsel %vm1058, %v2402, %v2361
      %v2404 = vrot.slane %v2361, 4
      %v2405 = vsel %vm1058, %v2385, %v2404
      %v2406 = vrot.slane %v2389, 4
      %v2407 = vsel %vm1058, %v2406, %v2365
      %v2408 = vrot.slane %v2365, 4
      %v2409 = vsel %vm1058, %v2389, %v2408
      %v2410 = vrot.slane %v2397, 4
      %v2411 = vsel %vm1058, %v2410, %v2373
      %v2412 = vrot.slane %v2373, 4
      %v2413 = vsel %vm1058, %v2397, %v2412
      %v2414 = vrot.slane %v2401, 4
      %v2415 = vsel %vm1058, %v2414, %v2377
      %v2416 = vrot.slane %v2377, 4
      %v2417 = vsel %vm1058, %v2401, %v2416
      %v2418 = vrot.slane %v836, 4
      %v2419 = vsel %vm1058, %v2418, %v826
      %v2420 = vrot.slane %v826, 4
      %v2421 = vsel %vm1058, %v836, %v2420
      %v2423 = vunpack.c.l.s4 1983009808
      %v2424 = vunpack.c.0.s8 %v2423
      %v2425 = vperm.slane %v2419, %v2424
      %v2427 = vunpack.c.l.s4 1983009808
      %v2428 = vunpack.c.0.s8 %v2427
      %v2429 = vperm.slane %v2421, %v2428
      %v2430 = vrot.slane %v841, 4
      %v2431 = vsel %vm1058, %v2430, %v831
      %v2432 = vrot.slane %v831, 4
      %v2433 = vsel %vm1058, %v841, %v2432
      %v2435 = vunpack.c.l.s4 1983009808
      %v2436 = vunpack.c.0.s8 %v2435
      %v2437 = vperm.slane %v2431, %v2436
      %v2439 = vunpack.c.l.s4 1983009808
      %v2440 = vunpack.c.0.s8 %v2439
      %v2441 = vperm.slane %v2433, %v2440
      %v2442 = vrot.slane %v856, 4
      %v2443 = vsel %vm1058, %v2442, %v846
      %v2444 = vrot.slane %v846, 4
      %v2445 = vsel %vm1058, %v856, %v2444
      %v2447 = vunpack.c.l.s4 1983009808
      %v2448 = vunpack.c.0.s8 %v2447
      %v2449 = vperm.slane %v2443, %v2448
      %v2451 = vunpack.c.l.s4 1983009808
      %v2452 = vunpack.c.0.s8 %v2451
      %v2453 = vperm.slane %v2445, %v2452
      %v2454 = vrot.slane %v861, 4
      %v2455 = vsel %vm1058, %v2454, %v851
      %v2456 = vrot.slane %v851, 4
      %v2457 = vsel %vm1058, %v861, %v2456
      %v2459 = vunpack.c.l.s4 1983009808
      %v2460 = vunpack.c.0.s8 %v2459
      %v2461 = vperm.slane %v2455, %v2460
      %v2463 = vunpack.c.l.s4 1983009808
      %v2464 = vunpack.c.0.s8 %v2463
      %v2465 = vperm.slane %v2457, %v2464
      %v2466 = vrot.slane %v2437, 4
      %v2467 = vsel %vm1058, %v2466, %v2425
      %v2468 = vrot.slane %v2425, 4
      %v2469 = vsel %vm1058, %v2437, %v2468
      %v2471 = vunpack.c.l.s4 1934713408
      %v2472 = vunpack.c.0.s8 %v2471
      %v2473 = vperm.slane %v2467, %v2472
      %v2475 = vunpack.c.l.s4 1934713408
      %v2476 = vunpack.c.0.s8 %v2475
      %v2477 = vperm.slane %v2469, %v2476
      %v2478 = vrot.slane %v2441, 4
      %v2479 = vsel %vm1058, %v2478, %v2429
      %v2480 = vrot.slane %v2429, 4
      %v2481 = vsel %vm1058, %v2441, %v2480
      %v2483 = vunpack.c.l.s4 1934713408
      %v2484 = vunpack.c.0.s8 %v2483
      %v2485 = vperm.slane %v2479, %v2484
      %v2487 = vunpack.c.l.s4 1934713408
      %v2488 = vunpack.c.0.s8 %v2487
      %v2489 = vperm.slane %v2481, %v2488
      %v2490 = vrot.slane %v2461, 4
      %v2491 = vsel %vm1058, %v2490, %v2449
      %v2492 = vrot.slane %v2449, 4
      %v2493 = vsel %vm1058, %v2461, %v2492
      %v2495 = vunpack.c.l.s4 1934713408
      %v2496 = vunpack.c.0.s8 %v2495
      %v2497 = vperm.slane %v2491, %v2496
      %v2499 = vunpack.c.l.s4 1934713408
      %v2500 = vunpack.c.0.s8 %v2499
      %v2501 = vperm.slane %v2493, %v2500
      %v2502 = vrot.slane %v2465, 4
      %v2503 = vsel %vm1058, %v2502, %v2453
      %v2504 = vrot.slane %v2453, 4
      %v2505 = vsel %vm1058, %v2465, %v2504
      %v2507 = vunpack.c.l.s4 1934713408
      %v2508 = vunpack.c.0.s8 %v2507
      %v2509 = vperm.slane %v2503, %v2508
      %v2511 = vunpack.c.l.s4 1934713408
      %v2512 = vunpack.c.0.s8 %v2511
      %v2513 = vperm.slane %v2505, %v2512
      %v2514 = vrot.slane %v2497, 4
      %v2515 = vsel %vm1058, %v2514, %v2473
      %v2516 = vrot.slane %v2473, 4
      %v2517 = vsel %vm1058, %v2497, %v2516
      %v2518 = vrot.slane %v2501, 4
      %v2519 = vsel %vm1058, %v2518, %v2477
      %v2520 = vrot.slane %v2477, 4
      %v2521 = vsel %vm1058, %v2501, %v2520
      %v2522 = vrot.slane %v2509, 4
      %v2523 = vsel %vm1058, %v2522, %v2485
      %v2524 = vrot.slane %v2485, 4
      %v2525 = vsel %vm1058, %v2509, %v2524
      %v2526 = vrot.slane %v2513, 4
      %v2527 = vsel %vm1058, %v2526, %v2489
      %v2528 = vrot.slane %v2489, 4
      %v2529 = vsel %vm1058, %v2513, %v2528
      %v2530 = vpack.c.bf16 %v2179, %v2179
      %v2531 = vpack.c.bf16 %v2291, %v2291
      %v2532 = vpack.c.bf16 %v2181, %v2181
      %v2533 = vpack.c.bf16 %v2293, %v2293
      %v2534 = vpack.c.bf16 %v2183, %v2183
      %v2535 = vpack.c.bf16 %v2295, %v2295
      %v2536 = vpack.c.bf16 %v2185, %v2185
      %v2537 = vpack.c.bf16 %v2297, %v2297
      %v2538 = vpack.c.bf16 %v2187, %v2187
      %v2539 = vpack.c.bf16 %v2299, %v2299
      %v2540 = vpack.c.bf16 %v2189, %v2189
      %v2541 = vpack.c.bf16 %v2301, %v2301
      %v2542 = vpack.c.bf16 %v2191, %v2191
      %v2543 = vpack.c.bf16 %v2303, %v2303
      %v2544 = vpack.c.bf16 %v2193, %v2193
      %v2545 = vpack.c.bf16 %v2305, %v2305
      %v2546 = vpack.c.bf16 %v2403, %v2403
      %v2547 = vpack.c.bf16 %v2515, %v2515
      %v2548 = vpack.c.bf16 %v2405, %v2405
      %v2549 = vpack.c.bf16 %v2517, %v2517
      %v2550 = vpack.c.bf16 %v2407, %v2407
      %v2551 = vpack.c.bf16 %v2519, %v2519
      %v2552 = vpack.c.bf16 %v2409, %v2409
      %v2553 = vpack.c.bf16 %v2521, %v2521
      %v2554 = vpack.c.bf16 %v2411, %v2411
      %v2555 = vpack.c.bf16 %v2523, %v2523
      %v2556 = vpack.c.bf16 %v2413, %v2413
      %v2557 = vpack.c.bf16 %v2525, %v2525
      %v2558 = vpack.c.bf16 %v2415, %v2415
      %v2559 = vpack.c.bf16 %v2527, %v2527
      %v2560 = vpack.c.bf16 %v2417, %v2417
      %v2561 = vpack.c.bf16 %v2529, %v2529
      %2562 = vst.msk [vmem:[%s468] sm:$0xf] %vm1024, %v2530
      %2563 = vst.msk [vmem:[%s468 + $0x4] sm:$0xf] %vm1024, %v2531
      %2564 = vst.msk [vmem:[%s468 + $0x8] sm:$0xf] %vm1024, %v2532
      %2565 = vst.msk [vmem:[%s468 + $0xc] sm:$0xf] %vm1024, %v2533
      %2566 = vst.msk [vmem:[%s468 + $0x10] sm:$0xf] %vm1024, %v2534
      %2567 = vst.msk [vmem:[%s468 + $0x14] sm:$0xf] %vm1024, %v2535
      %2568 = vst.msk [vmem:[%s468 + $0x18] sm:$0xf] %vm1024, %v2536
      %2569 = vst.msk [vmem:[%s468 + $0x1c] sm:$0xf] %vm1024, %v2537
      %2570 = vst.msk [vmem:[%s468 + $0x20] sm:$0xf] %vm1024, %v2538
      %2571 = vst.msk [vmem:[%s468 + $0x24] sm:$0xf] %vm1024, %v2539
      %2572 = vst.msk [vmem:[%s468 + $0x28] sm:$0xf] %vm1024, %v2540
      %2573 = vst.msk [vmem:[%s468 + $0x2c] sm:$0xf] %vm1024, %v2541
      %2574 = vst.msk [vmem:[%s468 + $0x30] sm:$0xf] %vm1024, %v2542
      %2575 = vst.msk [vmem:[%s468 + $0x34] sm:$0xf] %vm1024, %v2543
      %2576 = vst.msk [vmem:[%s468 + $0x38] sm:$0xf] %vm1024, %v2544
      %2577 = vst.msk [vmem:[%s468 + $0x3c] sm:$0xf] %vm1024, %v2545
      %2578 = vst.msk [vmem:[%s468 + $0x40] sm:$0xf] %vm1024, %v2546
      %2579 = vst.msk [vmem:[%s468 + $0x44] sm:$0xf] %vm1024, %v2547
      %2580 = vst.msk [vmem:[%s468 + $0x48] sm:$0xf] %vm1024, %v2548
      %2581 = vst.msk [vmem:[%s468 + $0x4c] sm:$0xf] %vm1024, %v2549
      %2582 = vst.msk [vmem:[%s468 + $0x50] sm:$0xf] %vm1024, %v2550
      %2583 = vst.msk [vmem:[%s468 + $0x54] sm:$0xf] %vm1024, %v2551
      %2584 = vst.msk [vmem:[%s468 + $0x58] sm:$0xf] %vm1024, %v2552
      %2585 = vst.msk [vmem:[%s468 + $0x5c] sm:$0xf] %vm1024, %v2553
      %2586 = vst.msk [vmem:[%s468 + $0x60] sm:$0xf] %vm1024, %v2554
      %2587 = vst.msk [vmem:[%s468 + $0x64] sm:$0xf] %vm1024, %v2555
      %2588 = vst.msk [vmem:[%s468 + $0x68] sm:$0xf] %vm1024, %v2556
      %2589 = vst.msk [vmem:[%s468 + $0x6c] sm:$0xf] %vm1024, %v2557
      %2590 = vst.msk [vmem:[%s468 + $0x70] sm:$0xf] %vm1024, %v2558
      %2591 = vst.msk [vmem:[%s468 + $0x74] sm:$0xf] %vm1024, %v2559
      %2592 = vst.msk [vmem:[%s468 + $0x78] sm:$0xf] %vm1024, %v2560
      %2593 = vst.msk [vmem:[%s468 + $0x7c] sm:$0xf] %vm1024, %v2561
      %s2594 = smul.u32 16, %s25
      %p2595 = scmp.lt.s32.totalorder %s24, 1
      %s2596 = scalar_select %p2595, %s24, 1
      %p2597 = scmp.lt.s32.totalorder %s2594, 15
      %s2598 = scalar_select %p2597, %s2594, 15
      %s2599 = smul.addr %s2598, 2
      %s2600 = smul.addr %s2596, 32
      %s2601 = sadd.s32 %s2599, %s2600
      %s2602 = smul.addr %s2601, 4
      %s2603 = scalar_lea.vmem %s3, %s2602
      %s2604 = smul.u32 16, %s25
      %p2605 = scmp.lt.s32.totalorder %s24, 1
      %s2606 = scalar_select %p2605, %s24, 1
      %p2607 = scmp.lt.s32.totalorder %s2604, 15
      %s2608 = scalar_select %p2607, %s2604, 15
      %s2609 = smul.addr %s2608, 2
      %s2610 = smul.addr %s2606, 32
      %s2611 = sadd.s32 %s2609, %s2610
      %s2612 = smul.addr %s2611, 4
      %s2613 = scalar_lea.vmem %s4, %s2612
      %s2614 = smul.u32 16, %s25
      %p2615 = scmp.lt.s32.totalorder %s24, 1
      %s2616 = scalar_select %p2615, %s24, 1
      %p2617 = scmp.lt.s32.totalorder %s2614, 15
      %s2618 = scalar_select %p2617, %s2614, 15
      %s2619 = smul.addr %s2618, 2
      %s2620 = smul.addr %s2616, 32
      %s2621 = sadd.s32 %s2619, %s2620
      %s2622 = smul.addr %s2621, 4
      %s2623 = scalar_lea.vmem %s5, %s2622
      %s2624 = smul.u32 2, %s25
      %p2625 = scmp.lt.s32.totalorder %s24, 1
      %s2626 = scalar_select %p2625, %s24, 1
      %p2627 = scmp.lt.s32.totalorder %s2624, 1
      %s2628 = scalar_select %p2627, %s2624, 1
      %s2629 = smul.addr %s2626, 32
      %s2630 = sadd.s32 %s2628, %s2629
      %s2631 = smul.addr %s2630, 4
      %s2632 = scalar_lea.vmem %s6, %s2631
      %s2633 = smul.u32 2, %s25
      %p2634 = scmp.lt.s32.totalorder %s24, 1
      %s2635 = scalar_select %p2634, %s24, 1
      %p2636 = scmp.lt.s32.totalorder %s2633, 1
      %s2637 = scalar_select %p2636, %s2633, 1
      %s2638 = smul.addr %s2635, 32
      %s2639 = sadd.s32 %s2637, %s2638
      %s2640 = smul.addr %s2639, 4
      %s2641 = scalar_lea.vmem %s7, %s2640
      %s2642 = smul.u32 2, %s25
      %p2643 = scmp.lt.s32.totalorder %s24, 1
      %s2644 = scalar_select %p2643, %s24, 1
      %p2645 = scmp.lt.s32.totalorder %s2642, 1
      %s2646 = scalar_select %p2645, %s2642, 1
      %s2647 = smul.addr %s2644, 32
      %s2648 = sadd.s32 %s2646, %s2647
      %s2649 = smul.addr %s2648, 4
      %s2650 = scalar_lea.vmem %s8, %s2649
      // Predicated region
      $region33: #{tpu_custom_call.1} parent=31 // pred_check
        %p2651 = pneg %p122
      $region34: #{tpu_custom_call.1} parent=31 // pred_check_branch
        %2653 = sbr.rel (%p2651) target = $region36
      $region35: #{tpu_custom_call.1} parent=31 // pred_region
        %s2654 = smul.u32 16, %s25
      $region36: #{tpu_custom_call.1} parent=31 // pred_fallthru
        _
      // Predicated region
      $region37: #{tpu_custom_call.1} parent=31 // pred_check
        %p2655 = pneg %p150
      $region38: #{tpu_custom_call.1} parent=31 // pred_check_branch
        %2657 = sbr.rel (%p2655) target = $region40
      $region39: #{tpu_custom_call.1} parent=31 // pred_region
        %s2658 = smul.u32 16, %s25
      $region40: #{tpu_custom_call.1} parent=31 // pred_fallthru
        _
      // Predicated region
      $region41: #{tpu_custom_call.1} parent=31 // pred_check
        %p2659 = pneg %p178
      $region42: #{tpu_custom_call.1} parent=31 // pred_check_branch
        %2661 = sbr.rel (%p2659) target = $region44
      $region43: #{tpu_custom_call.1} parent=31 // pred_region
        %s2662 = smul.u32 16, %s25
      $region44: #{tpu_custom_call.1} parent=31 // pred_fallthru
        _
      // Predicated region
      $region45: #{tpu_custom_call.1} parent=31 // pred_check
        %p2663 = pneg %p206
      $region46: #{tpu_custom_call.1} parent=31 // pred_check_branch
        %2665 = sbr.rel (%p2663) target = $region48
      $region47: #{tpu_custom_call.1} parent=31 // pred_region
        %s2666 = smul.u32 2, %s25
      $region48: #{tpu_custom_call.1} parent=31 // pred_fallthru
        _
      // Predicated region
      $region49: #{tpu_custom_call.1} parent=31 // pred_check
        %p2667 = pneg %p234
      $region50: #{tpu_custom_call.1} parent=31 // pred_check_branch
        %2669 = sbr.rel (%p2667) target = $region52
      $region51: #{tpu_custom_call.1} parent=31 // pred_region
        %s2670 = smul.u32 2, %s25
      $region52: #{tpu_custom_call.1} parent=31 // pred_fallthru
        _
      // Predicated region
      $region53: #{tpu_custom_call.1} parent=31 // pred_check
        %p2671 = pneg %p262
      $region54: #{tpu_custom_call.1} parent=31 // pred_check_branch
        %2673 = sbr.rel (%p2671) target = $region56
      $region55: #{tpu_custom_call.1} parent=31 // pred_region
        %s2674 = smul.u32 2, %s25
      $region56: #{tpu_custom_call.1} parent=31 // pred_fallthru
        _
    $region32: #{tpu_custom_call.1} parent=5 // pred_fallthru
      _
    %p2675 = scmp.le.s32.totalorder 2, %s15
    // Predicated region
    $region57: #{tpu_custom_call.1} parent=5 // pred_check
      %p2676 = pneg %p2675
    $region58: #{tpu_custom_call.1} parent=5 // pred_check_branch
      %2678 = sbr.rel (%p2676) target = $region60
    $region59: #{tpu_custom_call.1} parent=5 // pred_region
      %s2679 = ssub.s32 %s15, 2
      // Predicated region
      $region61: #{tpu_custom_call.1} parent=59 // pred_check
        %p2680 = pneg %p128
      $region62: #{tpu_custom_call.1} parent=59 // pred_check_branch
        %2682 = sbr.rel (%p2680) target = $region64
      $region63: #{tpu_custom_call.1} parent=59 // pred_region
        %s2683 = smul.u32 16, %s27
        %p2684 = scmp.lt.s32.totalorder %s26, 1
        %s2685 = scalar_select %p2684, %s26, 1
        %p2686 = scmp.lt.s32.totalorder %s2683, 15
        %s2687 = scalar_select %p2686, %s2683, 15
        %s2688 = smul.addr %s2687, 2
        %s2689 = smul.addr %s2685, 32
        %s2690 = sadd.s32 %s2688, %s2689
        %s2691 = smul.addr %s2690, 4
        %s2692 = scalar_lea.vmem %s3, %s2691
      $region64: #{tpu_custom_call.1} parent=59 // pred_fallthru
        _
      // Predicated region
      $region65: #{tpu_custom_call.1} parent=59 // pred_check
        %p2693 = pneg %p156
      $region66: #{tpu_custom_call.1} parent=59 // pred_check_branch
        %2695 = sbr.rel (%p2693) target = $region68
      $region67: #{tpu_custom_call.1} parent=59 // pred_region
        %s2696 = smul.u32 16, %s27
        %p2697 = scmp.lt.s32.totalorder %s26, 1
        %s2698 = scalar_select %p2697, %s26, 1
        %p2699 = scmp.lt.s32.totalorder %s2696, 15
        %s2700 = scalar_select %p2699, %s2696, 15
        %s2701 = smul.addr %s2700, 2
        %s2702 = smul.addr %s2698, 32
        %s2703 = sadd.s32 %s2701, %s2702
        %s2704 = smul.addr %s2703, 4
        %s2705 = scalar_lea.vmem %s4, %s2704
      $region68: #{tpu_custom_call.1} parent=59 // pred_fallthru
        _
      // Predicated region
      $region69: #{tpu_custom_call.1} parent=59 // pred_check
        %p2706 = pneg %p184
      $region70: #{tpu_custom_call.1} parent=59 // pred_check_branch
        %2708 = sbr.rel (%p2706) target = $region72
      $region71: #{tpu_custom_call.1} parent=59 // pred_region
        %s2709 = smul.u32 16, %s27
        %p2710 = scmp.lt.s32.totalorder %s26, 1
        %s2711 = scalar_select %p2710, %s26, 1
        %p2712 = scmp.lt.s32.totalorder %s2709, 15
        %s2713 = scalar_select %p2712, %s2709, 15
        %s2714 = smul.addr %s2713, 2
        %s2715 = smul.addr %s2711, 32
        %s2716 = sadd.s32 %s2714, %s2715
        %s2717 = smul.addr %s2716, 4
        %s2718 = scalar_lea.vmem %s5, %s2717
      $region72: #{tpu_custom_call.1} parent=59 // pred_fallthru
        _
      // Predicated region
      $region73: #{tpu_custom_call.1} parent=59 // pred_check
        %p2719 = pneg %p212
      $region74: #{tpu_custom_call.1} parent=59 // pred_check_branch
        %2721 = sbr.rel (%p2719) target = $region76
      $region75: #{tpu_custom_call.1} parent=59 // pred_region
        %s2722 = smul.u32 2, %s27
        %p2723 = scmp.lt.s32.totalorder %s26, 1
        %s2724 = scalar_select %p2723, %s26, 1
        %p2725 = scmp.lt.s32.totalorder %s2722, 1
        %s2726 = scalar_select %p2725, %s2722, 1
        %s2727 = smul.addr %s2724, 32
        %s2728 = sadd.s32 %s2726, %s2727
        %s2729 = smul.addr %s2728, 4
        %s2730 = scalar_lea.vmem %s6, %s2729
      $region76: #{tpu_custom_call.1} parent=59 // pred_fallthru
        _
      // Predicated region
      $region77: #{tpu_custom_call.1} parent=59 // pred_check
        %p2731 = pneg %p240
      $region78: #{tpu_custom_call.1} parent=59 // pred_check_branch
        %2733 = sbr.rel (%p2731) target = $region80
      $region79: #{tpu_custom_call.1} parent=59 // pred_region
        %s2734 = smul.u32 2, %s27
        %p2735 = scmp.lt.s32.totalorder %s26, 1
        %s2736 = scalar_select %p2735, %s26, 1
        %p2737 = scmp.lt.s32.totalorder %s2734, 1
        %s2738 = scalar_select %p2737, %s2734, 1
        %s2739 = smul.addr %s2736, 32
        %s2740 = sadd.s32 %s2738, %s2739
        %s2741 = smul.addr %s2740, 4
        %s2742 = scalar_lea.vmem %s7, %s2741
      $region80: #{tpu_custom_call.1} parent=59 // pred_fallthru
        _
      // Predicated region
      $region81: #{tpu_custom_call.1} parent=59 // pred_check
        %p2743 = pneg %p268
      $region82: #{tpu_custom_call.1} parent=59 // pred_check_branch
        %2745 = sbr.rel (%p2743) target = $region84
      $region83: #{tpu_custom_call.1} parent=59 // pred_region
        %s2746 = smul.u32 2, %s27
        %p2747 = scmp.lt.s32.totalorder %s26, 1
        %s2748 = scalar_select %p2747, %s26, 1
        %p2749 = scmp.lt.s32.totalorder %s2746, 1
        %s2750 = scalar_select %p2749, %s2746, 1
        %s2751 = smul.addr %s2748, 32
        %s2752 = sadd.s32 %s2750, %s2751
        %s2753 = smul.addr %s2752, 4
        %s2754 = scalar_lea.vmem %s8, %s2753
      $region84: #{tpu_custom_call.1} parent=59 // pred_fallthru
        _
    $region60: #{tpu_custom_call.1} parent=5 // pred_fallthru
      _
  $region6: #{tpu_custom_call.1} parent=0 // loop_footer
    %s19 = sadd.s32 1, %s15
  $region7: #{tpu_custom_call.1} parent=0 // loop_footer_branch
    %14 = sbr.rel target = $region3
  $region8: #{tpu_custom_call.1} parent=0 // loop_exit
    _

</llo_original>
